<compile_context>
chip_gen: v6e
topology: v6e:2x2x1
jax: 0.10.0
libtpu: 0.0.40
codegen_flags: <defaults>
</compile_context>

<pallas_src>
import functools

import jax
import jax.numpy as jnp
from jax.experimental import pallas as pl
from jax.experimental.pallas import tpu as pltpu

H = 96        # module hidden size (= args.hidden_size * 3, hidden_size = 32)
HP = 128      # hidden padded to one lane-dense vreg width
CP = 128      # class axis padded to lane-dense width (covers C <= 128)
FC2 = 1024    # fc2 width


# --------------------------------- kernel -----------------------------------
def _fused_kernel(x_ref, xrhs_ref, relWT_ref, w1b_ref, b1_ref, cmask_ref,
                  w2_ref, b2_ref, w3_ref, b3_ref, lnw_ref, lnb_ref,
                  logits_ref, out_ref):
    x = x_ref[...]                                           # (B, HP) f32, lanes >= H are 0

    # One MXU pass for x:  x @ [relW | w1a]  -> (B, CP + HP)
    xr = jnp.dot(x, xrhs_ref[...], preferred_element_type=jnp.float32)
    logits = xr[:, :CP]                                      # raw relation logits (padded cols = 0)
    gate_x = xr[:, CP:]                                      # x-half of fc1
    logits_ref[...] = logits.astype(logits_ref.dtype)

    # softmax over classes (padded classes masked to -1e30)
    ml = logits + cmask_ref[...]
    m = jnp.max(ml, axis=-1, keepdims=True)
    e = jnp.exp(ml - m)
    p = e * pl.reciprocal(jnp.sum(e, axis=-1, keepdims=True), approx=True)

    # reconstructed relation representation  (B, CP) @ (CP, HP)
    re_rel = jnp.dot(p, relWT_ref[...], preferred_element_type=jnp.float32)

    # gate = sigmoid(fc1([x, re_rel]))   (concat realised as two matmuls)
    gate_pre = gate_x + jnp.dot(re_rel, w1b_ref[...],
                                preferred_element_type=jnp.float32) + b1_ref[...]
    gate = pl.reciprocal(1.0 + jnp.exp(-gate_pre), approx=True)
    ctx = gate * x + (1.0 - gate) * re_rel

    # fc3(relu(fc2(ctx))) + x   — bf16 MXU operands, f32 accumulation
    h = jnp.dot(ctx.astype(jnp.bfloat16), w2_ref[...],
                preferred_element_type=jnp.float32) + b2_ref[...]
    h = jnp.maximum(h, 0.0)
    out = jnp.dot(h.astype(jnp.bfloat16), w3_ref[...],
                  preferred_element_type=jnp.float32) + b3_ref[...] + x

    # LayerNorm over the real H lanes only (padded lanes of `out` are exactly 0)
    lane = jax.lax.broadcasted_iota(jnp.int32, out.shape, 1)
    mu = jnp.sum(out, axis=-1, keepdims=True) * (1.0 / H)
    d = jnp.where(lane < H, out - mu, 0.0)
    var = jnp.sum(d * d, axis=-1, keepdims=True) * (1.0 / H)
    y = d * jax.lax.rsqrt(var + 1e-5)
    out_ref[...] = (y * lnw_ref[...] + lnb_ref[...]).astype(out_ref.dtype)


# -------------------------- one-time parameter prep --------------------------
def prepare_params(branch_params):
    """Host-side, one-time: transpose, split fc1, pad to lane-dense 128-wide
    tiles, pack [relW | w1a], cast fc2/fc3 weights to bf16, stack branches."""
    lists = {k: [] for k in ("xrhs", "relWT", "w1b", "b1", "cmask",
                             "w2", "b2", "w3", "b3", "lnw", "lnb")}
    num_classes = []
    for p in branch_params:
        relW = jnp.asarray(p["rel_w"], jnp.float32)           # torch Linear(C, H).weight -> (H, C)
        C = relW.shape[1]
        num_classes.append(int(C))

        w1 = jnp.asarray(p["fc1_w"], jnp.float32)             # torch Linear(2H, H).weight -> (H, 2H)
        assert w1.shape == (H, 2 * H), "fc1 weight must have torch layout (H, 2H)"
        w1a = jnp.zeros((HP, HP), jnp.float32).at[:H, :H].set(w1[:, :H].T)  # acts on x
        w1b = jnp.zeros((HP, HP), jnp.float32).at[:H, :H].set(w1[:, H:].T)  # acts on re_rel

        relW_p = jnp.zeros((HP, CP), jnp.float32).at[:H, :C].set(relW)
        lists["xrhs"].append(jnp.concatenate([relW_p, w1a], axis=1))        # (HP, CP+HP)
        lists["relWT"].append(jnp.zeros((CP, HP), jnp.float32).at[:C, :H].set(relW.T))
        lists["w1b"].append(w1b)
        lists["b1"].append(jnp.zeros((1, HP), jnp.float32).at[0, :H].set(p["fc1_b"]))
        lists["cmask"].append(
            jnp.where(jnp.arange(CP) < C, 0.0, -1e30).astype(jnp.float32).reshape(1, CP))
        lists["w2"].append(
            jnp.zeros((HP, FC2), jnp.float32).at[:H, :].set(p["fc2_w"].T).astype(jnp.bfloat16))
        lists["b2"].append(jnp.asarray(p["fc2_b"], jnp.float32).reshape(1, FC2))
        lists["w3"].append(
            jnp.zeros((FC2, HP), jnp.float32).at[:, :H].set(p["fc3_w"].T).astype(jnp.bfloat16))
        lists["b3"].append(jnp.zeros((1, HP), jnp.float32).at[0, :H].set(p["fc3_b"]))
        lists["lnw"].append(jnp.zeros((1, HP), jnp.float32).at[0, :H].set(p["ln_w"]))
        lists["lnb"].append(jnp.zeros((1, HP), jnp.float32).at[0, :H].set(p["ln_b"]))

    prep = {k: jnp.stack(v) for k, v in lists.items()}
    return prep, tuple(num_classes)


# --------------------------------- forward -----------------------------------
_ARG_ORDER = ("xrhs", "relWT", "w1b", "b1", "cmask", "w2", "b2", "w3", "b3", "lnw", "lnb")


@functools.partial(jax.jit, static_argnames=("num_classes",))
def relation_augmented_attention(x, prep, num_classes):
    B = x.shape[0]
    xp = jnp.pad(x.astype(jnp.float32), ((0, 0), (0, HP - H)))

    def branch_spec(a):
        nd = a.ndim - 1
        return pl.BlockSpec((None,) + a.shape[1:], lambda g, _n=nd: (g,) + (0,) * _n)

    args = [prep[k] for k in _ARG_ORDER]
    in_specs = [pl.BlockSpec((B, HP), lambda g: (0, 0))] + [branch_spec(a) for a in args]
    out_specs = (pl.BlockSpec((None, B, CP), lambda g: (g, 0, 0)),
                 pl.BlockSpec((None, B, HP), lambda g: (g, 0, 0)))
    out_shape = (jax.ShapeDtypeStruct((3, B, CP), jnp.float32),
                 jax.ShapeDtypeStruct((3, B, HP), jnp.float32))

    flops = 3 * 2 * B * (HP * (CP + HP) + CP * HP + HP * HP + HP * FC2 + FC2 * HP)
    transc = 3 * B * (CP + HP + 4)
    nbytes = (xp.size * 4
              + sum(a.size * a.dtype.itemsize for a in args)
              + 3 * B * (CP + HP) * 4)

    logits_pad, out_pad = pl.pallas_call(
        _fused_kernel,
        grid=(3,),
        in_specs=in_specs,
        out_specs=out_specs,
        out_shape=out_shape,
        compiler_params=pltpu.CompilerParams(dimension_semantics=("parallel",)),
        cost_estimate=pl.CostEstimate(flops=flops, transcendentals=transc,
                                      bytes_accessed=nbytes),
    )(xp, *args)

    results = []
    for i, c in enumerate(num_classes):
        results.append(logits_pad[i, :, :c])
        results.append(out_pad[i, :, :H])
    return tuple(results)


# ---------------- pure-JAX reference (PyTorch f32 semantics) -----------------
def _hier_ref(x, p):
    logits = x @ p["rel_w"]
    idx = jax.nn.softmax(logits, axis=-1)
    re_rel = idx @ p["rel_w"].T
    concat = jnp.concatenate([x, re_rel], axis=1)
    gate = jax.nn.sigmoid(concat @ p["fc1_w"].T + p["fc1_b"])
    ctx = gate * x + (1 - gate) * re_rel
    h = jax.nn.relu(ctx @ p["fc2_w"].T + p["fc2_b"])
    out = h @ p["fc3_w"].T + p["fc3_b"] + x
    mu = jnp.mean(out, axis=-1, keepdims=True)
    var = jnp.mean((out - mu) ** 2, axis=-1, keepdims=True)
    y = (out - mu) / jnp.sqrt(var + 1e-5)
    return logits, y * p["ln_w"] + p["ln_b"]


# ----------------------- deterministic parameter init ------------------------
def make_params(key, hidden, n_classes):
    ks = jax.random.split(key, 9)
    ortho = jax.nn.initializers.orthogonal()
    scale = 0.05
    return {
        "rel_w": ortho(ks[0], (hidden, n_classes), jnp.float32),   # nn.Linear(C, H).weight -> (H, C)
        "fc1_w": scale * jax.random.normal(ks[1], (hidden, 2 * hidden), jnp.float32),
        "fc1_b": scale * jax.random.normal(ks[2], (hidden,), jnp.float32),
        "fc2_w": scale * jax.random.normal(ks[3], (FC2, hidden), jnp.float32),
        "fc2_b": scale * jax.random.normal(ks[4], (FC2,), jnp.float32),
        "fc3_w": scale * jax.random.normal(ks[5], (hidden, FC2), jnp.float32),
        "fc3_b": scale * jax.random.normal(ks[6], (hidden,), jnp.float32),
        "ln_w": 1.0 + 0.01 * jax.random.normal(ks[7], (hidden,), jnp.float32),
        "ln_b": 0.01 * jax.random.normal(ks[8], (hidden,), jnp.float32),
    }


if __name__ == "__main__":
    batch = 8
    hier_classes = (8, 12, 16)

    key = jax.random.PRNGKey(0)
    kx, k1, k2, k3 = jax.random.split(key, 4)
    x = jax.random.normal(kx, (batch, H), jnp.float32)
    branch_params = [make_params(k, H, c) for k, c in zip((k1, k2, k3), hier_classes)]

    prep, num_classes = prepare_params(branch_params)   # one-time weight prep
    outs = jax.block_until_ready(relation_augmented_attention(x, prep, num_classes))

    # correctness check against the pure-f32 reference
    refs = []
    for p in branch_params:
        refs.extend(_hier_ref(x, p))
    # logits are pure f32 (tight); LN outputs use bf16 MXU operands for fc2/fc3
    # (f32 accumulation) + approx reciprocal -> slightly looser tolerance.
    tols = [1e-3, 5e-2] * 3
    for got, ref, tol in zip(outs, refs, tols):
        assert got.shape == ref.shape, (got.shape, ref.shape)
        err = float(jnp.max(jnp.abs(got - ref)))
        assert err < tol, (got.shape, err, tol)

    print("KERNEL_OK")
</pallas_src>

<mosaic_0001>
module attributes {stable_mosaic.version = 11 : i64} {
  func.func @_fused_kernel(%arg0: i32, %arg1: memref<8x128xf32, #tpu.memory_space<vmem>>, %arg2: memref<1x128x256xf32, #tpu.memory_space<vmem>>, %arg3: memref<1x128x128xf32, #tpu.memory_space<vmem>>, %arg4: memref<1x128x128xf32, #tpu.memory_space<vmem>>, %arg5: memref<1x1x128xf32, #tpu.memory_space<vmem>>, %arg6: memref<1x1x128xf32, #tpu.memory_space<vmem>>, %arg7: memref<1x128x1024xbf16, #tpu.memory_space<vmem>>, %arg8: memref<1x1x1024xf32, #tpu.memory_space<vmem>>, %arg9: memref<1x1024x128xbf16, #tpu.memory_space<vmem>>, %arg10: memref<1x1x128xf32, #tpu.memory_space<vmem>>, %arg11: memref<1x1x128xf32, #tpu.memory_space<vmem>>, %arg12: memref<1x1x128xf32, #tpu.memory_space<vmem>>, %arg13: memref<1x8x128xf32, #tpu.memory_space<vmem>>, %arg14: memref<1x8x128xf32, #tpu.memory_space<vmem>>) attributes {dimension_semantics = [#tpu.dimension_semantics<parallel>], iteration_bounds = array<i64: 3>, scalar_prefetch = 0 : i64, scratch_operands = 0 : i64, tpu.core_type = #tpu.core_type<tc>, window_params = [{pipeline_mode = #tpu.pipeline_mode<synchronous>, transform_indices = @transform_0, window_bounds = array<i64: 8, 128>}, {transform_indices = @transform_1, window_bounds = array<i64: 1, 128, 256>}, {transform_indices = @transform_2, window_bounds = array<i64: 1, 128, 128>}, {transform_indices = @transform_3, window_bounds = array<i64: 1, 128, 128>}, {transform_indices = @transform_4, window_bounds = array<i64: 1, 1, 128>}, {transform_indices = @transform_5, window_bounds = array<i64: 1, 1, 128>}, {transform_indices = @transform_6, window_bounds = array<i64: 1, 128, 1024>}, {transform_indices = @transform_7, window_bounds = array<i64: 1, 1, 1024>}, {transform_indices = @transform_8, window_bounds = array<i64: 1, 1024, 128>}, {transform_indices = @transform_9, window_bounds = array<i64: 1, 1, 128>}, {transform_indices = @transform_10, window_bounds = array<i64: 1, 1, 128>}, {transform_indices = @transform_11, window_bounds = array<i64: 1, 1, 128>}, {transform_indices = @transform_12, window_bounds = array<i64: 1, 8, 128>}, {transform_indices = @transform_13, window_bounds = array<i64: 1, 8, 128>}]} {
    %c0 = arith.constant 0 : index
    %c0_0 = arith.constant 0 : index
    %0 = vector.load %arg1[%c0, %c0_0] : memref<8x128xf32, #tpu.memory_space<vmem>>, vector<8x128xf32>
    %c0_1 = arith.constant 0 : index
    %c0_2 = arith.constant 0 : index
    %c0_3 = arith.constant 0 : index
    %1 = vector.load %arg2[%c0_1, %c0_2, %c0_3] : memref<1x128x256xf32, #tpu.memory_space<vmem>>, vector<1x128x256xf32>
    %2 = vector.shape_cast %1 : vector<1x128x256xf32> to vector<128x256xf32>
    %cst = arith.constant dense<0.000000e+00> : vector<8x256xf32>
    %3 = tpu.matmul %0, %2, %cst {dimension_numbers = #tpu.dot_dimension_numbers<[1], [0], [0], [1], [0, 0, 1, 1], [], []>} : vector<8x128xf32>, vector<128x256xf32>, vector<8x256xf32> -> vector<8x256xf32>
    %4 = vector.extract_strided_slice %3 {offsets = [0, 0], sizes = [8, 128], strides = [1, 1]} : vector<8x256xf32> to vector<8x128xf32>
    %5 = vector.extract_strided_slice %3 {offsets = [0, 128], sizes = [8, 128], strides = [1, 1]} : vector<8x256xf32> to vector<8x128xf32>
    %c0_4 = arith.constant 0 : index
    %c0_5 = arith.constant 0 : index
    %c0_6 = arith.constant 0 : index
    %6 = vector.load %arg13[%c0_4, %c0_5, %c0_6] : memref<1x8x128xf32, #tpu.memory_space<vmem>>, vector<1x8x128xf32>
    %7 = vector.shape_cast %6 : vector<1x8x128xf32> to vector<8x128xf32>
    %8 = vector.shape_cast %4 : vector<8x128xf32> to vector<1x8x128xf32>
    tpu.vector_store %arg13[%c0_4, %c0_5, %c0_6], %8 {strides = array<i32>} : memref<1x8x128xf32, #tpu.memory_space<vmem>>, vector<1x8x128xf32>,
    %c0_7 = arith.constant 0 : index
    %c0_8 = arith.constant 0 : index
    %c0_9 = arith.constant 0 : index
    %9 = vector.load %arg6[%c0_7, %c0_8, %c0_9] : memref<1x1x128xf32, #tpu.memory_space<vmem>>, vector<1x1x128xf32>
    %10 = vector.shape_cast %9 : vector<1x1x128xf32> to vector<1x128xf32>
    %11 = vector.broadcast %10 : vector<1x128xf32> to vector<8x128xf32>
    %12 = arith.addf %4, %11 : vector<8x128xf32>
    %cst_10 = arith.constant dense<0xFF800000> : vector<8xf32>
    %13 = vector.multi_reduction <maximumf>, %12, %cst_10 [1] : vector<8x128xf32> to vector<8xf32>
    %14 = vector.shape_cast %13 : vector<8xf32> to vector<8x1xf32>
    %15 = vector.broadcast %14 : vector<8x1xf32> to vector<8x128xf32>
    %16 = arith.subf %12, %15 : vector<8x128xf32>
    %17 = math.exp %16 : vector<8x128xf32>
    %cst_11 = arith.constant dense<0.000000e+00> : vector<8xf32>
    %18 = vector.multi_reduction <add>, %17, %cst_11 [1] : vector<8x128xf32> to vector<8xf32>
    %19 = vector.shape_cast %18 : vector<8xf32> to vector<8x1xf32>
    %20 = tpu.reciprocal %19 {approx = true} : vector<8x1xf32> -> vector<8x1xf32>
    %21 = vector.broadcast %20 : vector<8x1xf32> to vector<8x128xf32>
    %22 = arith.mulf %17, %21 : vector<8x128xf32>
    %c0_12 = arith.constant 0 : index
    %c0_13 = arith.constant 0 : index
    %c0_14 = arith.constant 0 : index
    %23 = vector.load %arg3[%c0_12, %c0_13, %c0_14] : memref<1x128x128xf32, #tpu.memory_space<vmem>>, vector<1x128x128xf32>
    %24 = vector.shape_cast %23 : vector<1x128x128xf32> to vector<128x128xf32>
    %cst_15 = arith.constant dense<0.000000e+00> : vector<8x128xf32>
    %25 = tpu.matmul %22, %24, %cst_15 {dimension_numbers = #tpu.dot_dimension_numbers<[1], [0], [0], [1], [0, 0, 1, 1], [], []>} : vector<8x128xf32>, vector<128x128xf32>, vector<8x128xf32> -> vector<8x128xf32>
    %c0_16 = arith.constant 0 : index
    %c0_17 = arith.constant 0 : index
    %c0_18 = arith.constant 0 : index
    %26 = vector.load %arg4[%c0_16, %c0_17, %c0_18] : memref<1x128x128xf32, #tpu.memory_space<vmem>>, vector<1x128x128xf32>
    %27 = vector.shape_cast %26 : vector<1x128x128xf32> to vector<128x128xf32>
    %cst_19 = arith.constant dense<0.000000e+00> : vector<8x128xf32>
    %28 = tpu.matmul %25, %27, %cst_19 {dimension_numbers = #tpu.dot_dimension_numbers<[1], [0], [0], [1], [0, 0, 1, 1], [], []>} : vector<8x128xf32>, vector<128x128xf32>, vector<8x128xf32> -> vector<8x128xf32>
    %29 = arith.addf %5, %28 : vector<8x128xf32>
    %c0_20 = arith.constant 0 : index
    %c0_21 = arith.constant 0 : index
    %c0_22 = arith.constant 0 : index
    %30 = vector.load %arg5[%c0_20, %c0_21, %c0_22] : memref<1x1x128xf32, #tpu.memory_space<vmem>>, vector<1x1x128xf32>
    %31 = vector.shape_cast %30 : vector<1x1x128xf32> to vector<1x128xf32>
    %32 = vector.broadcast %31 : vector<1x128xf32> to vector<8x128xf32>
    %33 = arith.addf %29, %32 : vector<8x128xf32>
    %cst_23 = arith.constant 0.000000e+00 : f32
    %34 = vector.broadcast %cst_23 : f32 to vector<8x128xf32>
    %35 = arith.subf %34, %33 : vector<8x128xf32>
    %36 = math.exp %35 : vector<8x128xf32>
    %cst_24 = arith.constant 1.000000e+00 : f32
    %37 = vector.broadcast %cst_24 : f32 to vector<8x128xf32>
    %38 = arith.addf %37, %36 : vector<8x128xf32>
    %39 = tpu.reciprocal %38 {approx = true} : vector<8x128xf32> -> vector<8x128xf32>
    %40 = arith.mulf %39, %0 : vector<8x128xf32>
    %cst_25 = arith.constant 1.000000e+00 : f32
    %41 = vector.broadcast %cst_25 : f32 to vector<8x128xf32>
    %42 = arith.subf %41, %39 : vector<8x128xf32>
    %43 = arith.mulf %42, %25 : vector<8x128xf32>
    %44 = arith.addf %40, %43 : vector<8x128xf32>
    %45 = arith.truncf %44 : vector<8x128xf32> to vector<8x128xbf16>
    %c0_26 = arith.constant 0 : index
    %c0_27 = arith.constant 0 : index
    %c0_28 = arith.constant 0 : index
    %46 = vector.load %arg7[%c0_26, %c0_27, %c0_28] : memref<1x128x1024xbf16, #tpu.memory_space<vmem>>, vector<1x128x1024xbf16>
    %47 = vector.shape_cast %46 : vector<1x128x1024xbf16> to vector<128x1024xbf16>
    %cst_29 = arith.constant dense<0.000000e+00> : vector<8x1024xf32>
    %48 = tpu.matmul %45, %47, %cst_29 {dimension_numbers = #tpu.dot_dimension_numbers<[1], [0], [0], [1], [0, 0, 1, 1], [], []>} : vector<8x128xbf16>, vector<128x1024xbf16>, vector<8x1024xf32> -> vector<8x1024xf32>
    %c0_30 = arith.constant 0 : index
    %c0_31 = arith.constant 0 : index
    %c0_32 = arith.constant 0 : index
    %49 = vector.load %arg8[%c0_30, %c0_31, %c0_32] : memref<1x1x1024xf32, #tpu.memory_space<vmem>>, vector<1x1x1024xf32>
    %50 = vector.shape_cast %49 : vector<1x1x1024xf32> to vector<1x1024xf32>
    %51 = vector.broadcast %50 : vector<1x1024xf32> to vector<8x1024xf32>
    %52 = arith.addf %48, %51 : vector<8x1024xf32>
    %cst_33 = arith.constant 0.000000e+00 : f32
    %53 = vector.broadcast %cst_33 : f32 to vector<8x1024xf32>
    %54 = arith.maximumf %52, %53 : vector<8x1024xf32>
    %55 = arith.truncf %54 : vector<8x1024xf32> to vector<8x1024xbf16>
    %c0_34 = arith.constant 0 : index
    %c0_35 = arith.constant 0 : index
    %c0_36 = arith.constant 0 : index
    %56 = vector.load %arg9[%c0_34, %c0_35, %c0_36] : memref<1x1024x128xbf16, #tpu.memory_space<vmem>>, vector<1x1024x128xbf16>
    %57 = vector.shape_cast %56 : vector<1x1024x128xbf16> to vector<1024x128xbf16>
    %cst_37 = arith.constant dense<0.000000e+00> : vector<8x128xf32>
    %58 = tpu.matmul %55, %57, %cst_37 {dimension_numbers = #tpu.dot_dimension_numbers<[1], [0], [0], [1], [0, 0, 1, 1], [], []>} : vector<8x1024xbf16>, vector<1024x128xbf16>, vector<8x128xf32> -> vector<8x128xf32>
    %c0_38 = arith.constant 0 : index
    %c0_39 = arith.constant 0 : index
    %c0_40 = arith.constant 0 : index
    %59 = vector.load %arg10[%c0_38, %c0_39, %c0_40] : memref<1x1x128xf32, #tpu.memory_space<vmem>>, vector<1x1x128xf32>
    %60 = vector.shape_cast %59 : vector<1x1x128xf32> to vector<1x128xf32>
    %61 = vector.broadcast %60 : vector<1x128xf32> to vector<8x128xf32>
    %62 = arith.addf %58, %61 : vector<8x128xf32>
    %63 = arith.addf %62, %0 : vector<8x128xf32>
    %64 = tpu.iota {dimensions = array<i32: 1>} : vector<8x128xi32>
    %cst_41 = arith.constant dense<0.000000e+00> : vector<8xf32>
    %65 = vector.multi_reduction <add>, %63, %cst_41 [1] : vector<8x128xf32> to vector<8xf32>
    %66 = vector.shape_cast %65 : vector<8xf32> to vector<8x1xf32>
    %cst_42 = arith.constant 0.010416667 : f32
    %67 = vector.broadcast %cst_42 : f32 to vector<8x1xf32>
    %68 = arith.mulf %66, %67 : vector<8x1xf32>
    %c96_i32 = arith.constant 96 : i32
    %69 = vector.broadcast %c96_i32 : i32 to vector<8x128xi32>
    %70 = arith.cmpi slt, %64, %69 : vector<8x128xi32>
    %71 = vector.broadcast %68 : vector<8x1xf32> to vector<8x128xf32>
    %72 = arith.subf %63, %71 : vector<8x128xf32>
    %cst_43 = arith.constant 0.000000e+00 : f32
    %73 = vector.broadcast %cst_43 : f32 to vector<8x128xf32>
    %74 = arith.select %70, %72, %73 : vector<8x128xi1>, vector<8x128xf32>
    %75 = arith.mulf %74, %74 : vector<8x128xf32>
    %cst_44 = arith.constant dense<0.000000e+00> : vector<8xf32>
    %76 = vector.multi_reduction <add>, %75, %cst_44 [1] : vector<8x128xf32> to vector<8xf32>
    %77 = vector.shape_cast %76 : vector<8xf32> to vector<8x1xf32>
    %cst_45 = arith.constant 0.010416667 : f32
    %78 = vector.broadcast %cst_45 : f32 to vector<8x1xf32>
    %79 = arith.mulf %77, %78 : vector<8x1xf32>
    %cst_46 = arith.constant 9.99999974E-6 : f32
    %80 = vector.broadcast %cst_46 : f32 to vector<8x1xf32>
    %81 = arith.addf %79, %80 : vector<8x1xf32>
    %82 = math.rsqrt %81 : vector<8x1xf32>
    %83 = vector.broadcast %82 : vector<8x1xf32> to vector<8x128xf32>
    %84 = arith.mulf %74, %83 : vector<8x128xf32>
    %c0_47 = arith.constant 0 : index
    %c0_48 = arith.constant 0 : index
    %c0_49 = arith.constant 0 : index
    %85 = vector.load %arg11[%c0_47, %c0_48, %c0_49] : memref<1x1x128xf32, #tpu.memory_space<vmem>>, vector<1x1x128xf32>
    %86 = vector.shape_cast %85 : vector<1x1x128xf32> to vector<1x128xf32>
    %87 = vector.broadcast %86 : vector<1x128xf32> to vector<8x128xf32>
    %88 = arith.mulf %84, %87 : vector<8x128xf32>
    %c0_50 = arith.constant 0 : index
    %c0_51 = arith.constant 0 : index
    %c0_52 = arith.constant 0 : index
    %89 = vector.load %arg12[%c0_50, %c0_51, %c0_52] : memref<1x1x128xf32, #tpu.memory_space<vmem>>, vector<1x1x128xf32>
    %90 = vector.shape_cast %89 : vector<1x1x128xf32> to vector<1x128xf32>
    %91 = vector.broadcast %90 : vector<1x128xf32> to vector<8x128xf32>
    %92 = arith.addf %88, %91 : vector<8x128xf32>
    %c0_53 = arith.constant 0 : index
    %c0_54 = arith.constant 0 : index
    %c0_55 = arith.constant 0 : index
    %93 = vector.load %arg14[%c0_53, %c0_54, %c0_55] : memref<1x8x128xf32, #tpu.memory_space<vmem>>, vector<1x8x128xf32>
    %94 = vector.shape_cast %93 : vector<1x8x128xf32> to vector<8x128xf32>
    %95 = vector.shape_cast %92 : vector<8x128xf32> to vector<1x8x128xf32>
    tpu.vector_store %arg14[%c0_53, %c0_54, %c0_55], %95 {strides = array<i32>} : memref<1x8x128xf32, #tpu.memory_space<vmem>>, vector<1x8x128xf32>,
    return
  }
  func.func @transform_0(%arg0: i32) -> (i32, i32) {
    %c0_i32 = arith.constant 0 : i32
    %c0_i32_0 = arith.constant 0 : i32
    %c0_i32_1 = arith.constant 0 : i32
    return %c0_i32, %c0_i32_0 : i32, i32
  }
  func.func @transform_1(%arg0: i32) -> (i32, i32, i32) {
    %c0_i32 = arith.constant 0 : i32
    %c0_i32_0 = arith.constant 0 : i32
    %c0_i32_1 = arith.constant 0 : i32
    return %arg0, %c0_i32, %c0_i32_0 : i32, i32, i32
  }
  func.func @transform_2(%arg0: i32) -> (i32, i32, i32) {
    %c0_i32 = arith.constant 0 : i32
    %c0_i32_0 = arith.constant 0 : i32
    %c0_i32_1 = arith.constant 0 : i32
    return %arg0, %c0_i32, %c0_i32_0 : i32, i32, i32
  }
  func.func @transform_3(%arg0: i32) -> (i32, i32, i32) {
    %c0_i32 = arith.constant 0 : i32
    %c0_i32_0 = arith.constant 0 : i32
    %c0_i32_1 = arith.constant 0 : i32
    return %arg0, %c0_i32, %c0_i32_0 : i32, i32, i32
  }
  func.func @transform_4(%arg0: i32) -> (i32, i32, i32) {
    %c0_i32 = arith.constant 0 : i32
    %c0_i32_0 = arith.constant 0 : i32
    %c0_i32_1 = arith.constant 0 : i32
    return %arg0, %c0_i32, %c0_i32_0 : i32, i32, i32
  }
  func.func @transform_5(%arg0: i32) -> (i32, i32, i32) {
    %c0_i32 = arith.constant 0 : i32
    %c0_i32_0 = arith.constant 0 : i32
    %c0_i32_1 = arith.constant 0 : i32
    return %arg0, %c0_i32, %c0_i32_0 : i32, i32, i32
  }
  func.func @transform_6(%arg0: i32) -> (i32, i32, i32) {
    %c0_i32 = arith.constant 0 : i32
    %c0_i32_0 = arith.constant 0 : i32
    %c0_i32_1 = arith.constant 0 : i32
    return %arg0, %c0_i32, %c0_i32_0 : i32, i32, i32
  }
  func.func @transform_7(%arg0: i32) -> (i32, i32, i32) {
    %c0_i32 = arith.constant 0 : i32
    %c0_i32_0 = arith.constant 0 : i32
    %c0_i32_1 = arith.constant 0 : i32
    return %arg0, %c0_i32, %c0_i32_0 : i32, i32, i32
  }
  func.func @transform_8(%arg0: i32) -> (i32, i32, i32) {
    %c0_i32 = arith.constant 0 : i32
    %c0_i32_0 = arith.constant 0 : i32
    %c0_i32_1 = arith.constant 0 : i32
    return %arg0, %c0_i32, %c0_i32_0 : i32, i32, i32
  }
  func.func @transform_9(%arg0: i32) -> (i32, i32, i32) {
    %c0_i32 = arith.constant 0 : i32
    %c0_i32_0 = arith.constant 0 : i32
    %c0_i32_1 = arith.constant 0 : i32
    return %arg0, %c0_i32, %c0_i32_0 : i32, i32, i32
  }
  func.func @transform_10(%arg0: i32) -> (i32, i32, i32) {
    %c0_i32 = arith.constant 0 : i32
    %c0_i32_0 = arith.constant 0 : i32
    %c0_i32_1 = arith.constant 0 : i32
    return %arg0, %c0_i32, %c0_i32_0 : i32, i32, i32
  }
  func.func @transform_11(%arg0: i32) -> (i32, i32, i32) {
    %c0_i32 = arith.constant 0 : i32
    %c0_i32_0 = arith.constant 0 : i32
    %c0_i32_1 = arith.constant 0 : i32
    return %arg0, %c0_i32, %c0_i32_0 : i32, i32, i32
  }
  func.func @transform_12(%arg0: i32) -> (i32, i32, i32) {
    %c0_i32 = arith.constant 0 : i32
    %c0_i32_0 = arith.constant 0 : i32
    %c0_i32_1 = arith.constant 0 : i32
    return %arg0, %c0_i32, %c0_i32_0 : i32, i32, i32
  }
  func.func @transform_13(%arg0: i32) -> (i32, i32, i32) {
    %c0_i32 = arith.constant 0 : i32
    %c0_i32_0 = arith.constant 0 : i32
    %c0_i32_1 = arith.constant 0 : i32
    return %arg0, %c0_i32, %c0_i32_0 : i32, i32, i32
  }
}

</mosaic_0001>

<llo_original>
// kernel: relation_augmented_attention.1
$region0: #{relation_augmented_attention.1}
  #allocation0 [shape = 'u32[]', space=smem, size = 0x4, offset = 0x4, fixed_abs, tag = 'smem constant byte address 0x4 - core index']
  #allocation1 [shape = 'u32[144,128]{1,0:T(1,128)}', space=vmem, size = 0x12000, scoped, tag = 'internal scratch']
  %s0 = inlined_call_operand.vmem [shape: f32[8,128], index: 0, kind: input, shape index: {}]
  %s1 = inlined_call_operand.hbm [shape: f32[3,128,256], index: 1, kind: input, shape index: {}]
  %s2 = inlined_call_operand.hbm [shape: f32[3,128,128], index: 2, kind: input, shape index: {}]
  %s3 = inlined_call_operand.hbm [shape: f32[3,128,128], index: 3, kind: input, shape index: {}]
  %s4 = inlined_call_operand.vmem [shape: f32[3,1,128], index: 4, kind: input, shape index: {}]
  %s5 = inlined_call_operand.vmem [shape: f32[3,1,128], index: 5, kind: input, shape index: {}]
  %s6 = inlined_call_operand.hbm [shape: bf16[3,128,1024], index: 6, kind: input, shape index: {}]
  %s7 = inlined_call_operand.hbm [shape: f32[3,1,1024], index: 7, kind: input, shape index: {}]
  %s8 = inlined_call_operand.hbm [shape: bf16[3,1024,128], index: 8, kind: input, shape index: {}]
  %s9 = inlined_call_operand.vmem [shape: f32[3,1,128], index: 9, kind: input, shape index: {}]
  %s10 = inlined_call_operand.vmem [shape: f32[3,1,128], index: 10, kind: input, shape index: {}]
  %s11 = inlined_call_operand.vmem [shape: f32[3,1,128], index: 11, kind: input, shape index: {}]
  %s12 = inlined_call_operand.vmem [shape: f32[3,8,128], index: 12, kind: output, shape index: {0}]
  %s13 = inlined_call_operand.vmem [shape: f32[3,8,128], index: 13, kind: output, shape index: {1}]
  %14 = xla_tuple %s12, %s13
  %s15 = sld [smem:[#allocation0]]
  $region113: #{relation_augmented_attention.1} parent=0
    _
  %s17 = ssub.s32 1, %s15
  %s18 = scalar_select 0, %s17, %s15
  $region1: #{relation_augmented_attention.1} parent=0
    #allocation2 [shape = 'u8[262144]{0}', space=vmem, size = 0x40000, scoped, tag = 'input window, operand 1']
    #allocation3 [shape = 's32[2]{0}', space=sflag, size = 0x8, scoped, tag = 'scoped memory for relation_augmented_attention.1']
    #allocation4 [shape = 'u8[131072]{0}', space=vmem, size = 0x20000, scoped, tag = 'input window, operand 2']
    #allocation5 [shape = 's32[2]{0}', space=sflag, size = 0x8, scoped, tag = 'scoped memory for relation_augmented_attention.1']
    #allocation6 [shape = 'u8[131072]{0}', space=vmem, size = 0x20000, scoped, tag = 'input window, operand 3']
    #allocation7 [shape = 'u8[524288]{0}', space=vmem, size = 0x80000, scoped, tag = 'input window, operand 6']
    #allocation8 [shape = 's32[2]{0}', space=sflag, size = 0x8, scoped, tag = 'scoped memory for relation_augmented_attention.1']
    #allocation9 [shape = 'u8[8192]{0}', space=vmem, size = 0x2000, scoped, tag = 'input window, operand 7']
    #allocation10 [shape = 'u8[524288]{0}', space=vmem, size = 0x80000, scoped, tag = 'input window, operand 8']
    #allocation11 [shape = 's32[2]{0}', space=sflag, size = 0x8, scoped, tag = 'scoped memory for relation_augmented_attention.1']
    %19 = vsyncpa [#allocation3], 0
    %s20 = scalar_lea.sflag [#allocation3], 1
    %21 = vsyncpa %s20, 0
    %22 = vsyncpa [#allocation5], 0
    %s23 = scalar_lea.sflag [#allocation5], 1
    %24 = vsyncpa %s23, 0
    %25 = vsyncpa [#allocation8], 0
    %s26 = scalar_lea.sflag [#allocation8], 1
    %27 = vsyncpa %s26, 0
    %28 = vsyncpa [#allocation11], 0
    %s29 = scalar_lea.sflag [#allocation11], 1
    %30 = vsyncpa %s29, 0
    loop: start=0, step=1, limit=5
    $region2: #{relation_augmented_attention.1} parent=1 // loop_pre_header
      _
    $region3: #{relation_augmented_attention.1} parent=1 // loop_header
      %s32 = sphi 0, %s36
      %p33 = scmp.ge.s32.totalorder %s32, 5
      %s40 = sphi 0, %s40
      %s42 = sphi 0, %s40
      %s43 = sphi 0, %s42
      %s57 = sphi 0, %s43
      %s63 = sphi 0, %s65
      %s66 = sphi 0, %s63
      %s67 = sphi 0, %s66
      %s83 = sphi 0, %s67
      %s89 = sphi 0, %s91
      %s92 = sphi 0, %s89
      %s93 = sphi 0, %s92
      %s109 = sphi 0, %s93
      %s115 = sphi 0, %s117
      %s118 = sphi 0, %s115
      %s119 = sphi 0, %s118
      %s135 = sphi 0, %s119
      %s141 = sphi 0, %s143
      %s144 = sphi 0, %s141
      %s145 = sphi 0, %s144
      %s161 = sphi 0, %s145
      %s167 = sphi 0, %s169
      %s170 = sphi 0, %s167
      %s171 = sphi 0, %s170
      %s187 = sphi 0, %s171
      %s193 = sphi 0, %s195
      %s196 = sphi 0, %s193
      %s197 = sphi 0, %s196
      %s213 = sphi 0, %s197
      %s219 = sphi 0, %s221
      %s222 = sphi 0, %s219
      %s223 = sphi 0, %s222
      %s239 = sphi 0, %s223
      %s245 = sphi 0, %s247
      %s248 = sphi 0, %s245
      %s249 = sphi 0, %s248
      %s265 = sphi 0, %s249
      %s271 = sphi 0, %s273
      %s274 = sphi 0, %s271
      %s275 = sphi 0, %s274
      %s291 = sphi 0, %s275
      %s297 = sphi 0, %s299
      %s300 = sphi 0, %s297
      %s301 = sphi 0, %s300
      %s317 = sphi 0, %s301
      %s323 = sphi 0, %s325
      %s326 = sphi 0, %s323
      %s327 = sphi 0, %s326
      %s343 = sphi 0, %s327
      %s349 = sphi 0, %s351
      %s352 = sphi 0, %s349
      %s353 = sphi 0, %s352
      %s369 = sphi 0, %s353
      %s375 = sphi 0, %s377
      %s378 = sphi 0, %s375
      %s379 = sphi 0, %s378
      %s395 = sphi 0, %s379
    $region4: #{relation_augmented_attention.1} parent=1 // loop_header_branch
      %35 = sbr.rel (%p33) target = $region8
    $region5: #{relation_augmented_attention.1} parent=1 // loop_body
      %s37 = ssub.s32 %s32, 1
      %s38 = ssub.s32 %s32, 2
      %s39 = sadd.s32 %s32, 1
      %s41 = sadd.s32 %s40, 1
      %p44 = scmp.eq.s32.totalorder %s32, 2
      %p45 = scmp.ne.s32.totalorder %s40, %s42
      %p46 = scmp.eq.s32.totalorder %s32, 0
      %p47 = por %p45, %p46
      %p48 = scmp.ne.s32.totalorder %s40, %s42
      %p49 = scmp.eq.s32.totalorder %s37, 2
      %p50 = por %p48, %p49
      %p51 = scmp.ne.s32.totalorder %s42, %s43
      %p52 = scmp.eq.s32.totalorder %s37, 0
      %p53 = por %p51, %p52
      %p54 = scmp.ne.s32.totalorder %s42, %s43
      %p55 = scmp.eq.s32.totalorder %s38, 2
      %p56 = por %p54, %p55
      %p58 = scmp.ne.s32.totalorder %s43, %s57
      %p59 = scmp.eq.s32.totalorder %s38, 0
      %p60 = por %p58, %p59
      %s61 = ssub.s32 %s32, %s39
      %p62 = scmp.eq.s32.totalorder %s61, 0
      %s64 = sadd.s32 %s63, 1
      %s65 = scalar_select %p62, %s63, %s64
      %p68 = pneg %p62
      %p69 = scmp.eq.s32.totalorder %s32, 2
      %p70 = por %p68, %p69
      %p71 = scmp.ne.s32.totalorder %s63, %s66
      %p72 = scmp.eq.s32.totalorder %s32, 0
      %p73 = por %p71, %p72
      %p74 = scmp.ne.s32.totalorder %s63, %s66
      %p75 = scmp.eq.s32.totalorder %s37, 2
      %p76 = por %p74, %p75
      %p77 = scmp.ne.s32.totalorder %s66, %s67
      %p78 = scmp.eq.s32.totalorder %s37, 0
      %p79 = por %p77, %p78
      %p80 = scmp.ne.s32.totalorder %s66, %s67
      %p81 = scmp.eq.s32.totalorder %s38, 2
      %p82 = por %p80, %p81
      %p84 = scmp.ne.s32.totalorder %s67, %s83
      %p85 = scmp.eq.s32.totalorder %s38, 0
      %p86 = por %p84, %p85
      %s87 = ssub.s32 %s32, %s39
      %p88 = scmp.eq.s32.totalorder %s87, 0
      %s90 = sadd.s32 %s89, 1
      %s91 = scalar_select %p88, %s89, %s90
      %p94 = pneg %p88
      %p95 = scmp.eq.s32.totalorder %s32, 2
      %p96 = por %p94, %p95
      %p97 = scmp.ne.s32.totalorder %s89, %s92
      %p98 = scmp.eq.s32.totalorder %s32, 0
      %p99 = por %p97, %p98
      %p100 = scmp.ne.s32.totalorder %s89, %s92
      %p101 = scmp.eq.s32.totalorder %s37, 2
      %p102 = por %p100, %p101
      %p103 = scmp.ne.s32.totalorder %s92, %s93
      %p104 = scmp.eq.s32.totalorder %s37, 0
      %p105 = por %p103, %p104
      %p106 = scmp.ne.s32.totalorder %s92, %s93
      %p107 = scmp.eq.s32.totalorder %s38, 2
      %p108 = por %p106, %p107
      %p110 = scmp.ne.s32.totalorder %s93, %s109
      %p111 = scmp.eq.s32.totalorder %s38, 0
      %p112 = por %p110, %p111
      %s113 = ssub.s32 %s32, %s39
      %p114 = scmp.eq.s32.totalorder %s113, 0
      %s116 = sadd.s32 %s115, 1
      %s117 = scalar_select %p114, %s115, %s116
      %p120 = pneg %p114
      %p121 = scmp.eq.s32.totalorder %s32, 2
      %p122 = por %p120, %p121
      %p123 = scmp.ne.s32.totalorder %s115, %s118
      %p124 = scmp.eq.s32.totalorder %s32, 0
      %p125 = por %p123, %p124
      %p126 = scmp.ne.s32.totalorder %s115, %s118
      %p127 = scmp.eq.s32.totalorder %s37, 2
      %p128 = por %p126, %p127
      %p129 = scmp.ne.s32.totalorder %s118, %s119
      %p130 = scmp.eq.s32.totalorder %s37, 0
      %p131 = por %p129, %p130
      %p132 = scmp.ne.s32.totalorder %s118, %s119
      %p133 = scmp.eq.s32.totalorder %s38, 2
      %p134 = por %p132, %p133
      %p136 = scmp.ne.s32.totalorder %s119, %s135
      %p137 = scmp.eq.s32.totalorder %s38, 0
      %p138 = por %p136, %p137
      %s139 = ssub.s32 %s32, %s39
      %p140 = scmp.eq.s32.totalorder %s139, 0
      %s142 = sadd.s32 %s141, 1
      %s143 = scalar_select %p140, %s141, %s142
      %p146 = pneg %p140
      %p147 = scmp.eq.s32.totalorder %s32, 2
      %p148 = por %p146, %p147
      %p149 = scmp.ne.s32.totalorder %s141, %s144
      %p150 = scmp.eq.s32.totalorder %s32, 0
      %p151 = por %p149, %p150
      %p152 = scmp.ne.s32.totalorder %s141, %s144
      %p153 = scmp.eq.s32.totalorder %s37, 2
      %p154 = por %p152, %p153
      %p155 = scmp.ne.s32.totalorder %s144, %s145
      %p156 = scmp.eq.s32.totalorder %s37, 0
      %p157 = por %p155, %p156
      %p158 = scmp.ne.s32.totalorder %s144, %s145
      %p159 = scmp.eq.s32.totalorder %s38, 2
      %p160 = por %p158, %p159
      %p162 = scmp.ne.s32.totalorder %s145, %s161
      %p163 = scmp.eq.s32.totalorder %s38, 0
      %p164 = por %p162, %p163
      %s165 = ssub.s32 %s32, %s39
      %p166 = scmp.eq.s32.totalorder %s165, 0
      %s168 = sadd.s32 %s167, 1
      %s169 = scalar_select %p166, %s167, %s168
      %p172 = pneg %p166
      %p173 = scmp.eq.s32.totalorder %s32, 2
      %p174 = por %p172, %p173
      %p175 = scmp.ne.s32.totalorder %s167, %s170
      %p176 = scmp.eq.s32.totalorder %s32, 0
      %p177 = por %p175, %p176
      %p178 = scmp.ne.s32.totalorder %s167, %s170
      %p179 = scmp.eq.s32.totalorder %s37, 2
      %p180 = por %p178, %p179
      %p181 = scmp.ne.s32.totalorder %s170, %s171
      %p182 = scmp.eq.s32.totalorder %s37, 0
      %p183 = por %p181, %p182
      %p184 = scmp.ne.s32.totalorder %s170, %s171
      %p185 = scmp.eq.s32.totalorder %s38, 2
      %p186 = por %p184, %p185
      %p188 = scmp.ne.s32.totalorder %s171, %s187
      %p189 = scmp.eq.s32.totalorder %s38, 0
      %p190 = por %p188, %p189
      %s191 = ssub.s32 %s32, %s39
      %p192 = scmp.eq.s32.totalorder %s191, 0
      %s194 = sadd.s32 %s193, 1
      %s195 = scalar_select %p192, %s193, %s194
      %p198 = pneg %p192
      %p199 = scmp.eq.s32.totalorder %s32, 2
      %p200 = por %p198, %p199
      %p201 = scmp.ne.s32.totalorder %s193, %s196
      %p202 = scmp.eq.s32.totalorder %s32, 0
      %p203 = por %p201, %p202
      %p204 = scmp.ne.s32.totalorder %s193, %s196
      %p205 = scmp.eq.s32.totalorder %s37, 2
      %p206 = por %p204, %p205
      %p207 = scmp.ne.s32.totalorder %s196, %s197
      %p208 = scmp.eq.s32.totalorder %s37, 0
      %p209 = por %p207, %p208
      %p210 = scmp.ne.s32.totalorder %s196, %s197
      %p211 = scmp.eq.s32.totalorder %s38, 2
      %p212 = por %p210, %p211
      %p214 = scmp.ne.s32.totalorder %s197, %s213
      %p215 = scmp.eq.s32.totalorder %s38, 0
      %p216 = por %p214, %p215
      %s217 = ssub.s32 %s32, %s39
      %p218 = scmp.eq.s32.totalorder %s217, 0
      %s220 = sadd.s32 %s219, 1
      %s221 = scalar_select %p218, %s219, %s220
      %p224 = pneg %p218
      %p225 = scmp.eq.s32.totalorder %s32, 2
      %p226 = por %p224, %p225
      %p227 = scmp.ne.s32.totalorder %s219, %s222
      %p228 = scmp.eq.s32.totalorder %s32, 0
      %p229 = por %p227, %p228
      %p230 = scmp.ne.s32.totalorder %s219, %s222
      %p231 = scmp.eq.s32.totalorder %s37, 2
      %p232 = por %p230, %p231
      %p233 = scmp.ne.s32.totalorder %s222, %s223
      %p234 = scmp.eq.s32.totalorder %s37, 0
      %p235 = por %p233, %p234
      %p236 = scmp.ne.s32.totalorder %s222, %s223
      %p237 = scmp.eq.s32.totalorder %s38, 2
      %p238 = por %p236, %p237
      %p240 = scmp.ne.s32.totalorder %s223, %s239
      %p241 = scmp.eq.s32.totalorder %s38, 0
      %p242 = por %p240, %p241
      %s243 = ssub.s32 %s32, %s39
      %p244 = scmp.eq.s32.totalorder %s243, 0
      %s246 = sadd.s32 %s245, 1
      %s247 = scalar_select %p244, %s245, %s246
      %p250 = pneg %p244
      %p251 = scmp.eq.s32.totalorder %s32, 2
      %p252 = por %p250, %p251
      %p253 = scmp.ne.s32.totalorder %s245, %s248
      %p254 = scmp.eq.s32.totalorder %s32, 0
      %p255 = por %p253, %p254
      %p256 = scmp.ne.s32.totalorder %s245, %s248
      %p257 = scmp.eq.s32.totalorder %s37, 2
      %p258 = por %p256, %p257
      %p259 = scmp.ne.s32.totalorder %s248, %s249
      %p260 = scmp.eq.s32.totalorder %s37, 0
      %p261 = por %p259, %p260
      %p262 = scmp.ne.s32.totalorder %s248, %s249
      %p263 = scmp.eq.s32.totalorder %s38, 2
      %p264 = por %p262, %p263
      %p266 = scmp.ne.s32.totalorder %s249, %s265
      %p267 = scmp.eq.s32.totalorder %s38, 0
      %p268 = por %p266, %p267
      %s269 = ssub.s32 %s32, %s39
      %p270 = scmp.eq.s32.totalorder %s269, 0
      %s272 = sadd.s32 %s271, 1
      %s273 = scalar_select %p270, %s271, %s272
      %p276 = pneg %p270
      %p277 = scmp.eq.s32.totalorder %s32, 2
      %p278 = por %p276, %p277
      %p279 = scmp.ne.s32.totalorder %s271, %s274
      %p280 = scmp.eq.s32.totalorder %s32, 0
      %p281 = por %p279, %p280
      %p282 = scmp.ne.s32.totalorder %s271, %s274
      %p283 = scmp.eq.s32.totalorder %s37, 2
      %p284 = por %p282, %p283
      %p285 = scmp.ne.s32.totalorder %s274, %s275
      %p286 = scmp.eq.s32.totalorder %s37, 0
      %p287 = por %p285, %p286
      %p288 = scmp.ne.s32.totalorder %s274, %s275
      %p289 = scmp.eq.s32.totalorder %s38, 2
      %p290 = por %p288, %p289
      %p292 = scmp.ne.s32.totalorder %s275, %s291
      %p293 = scmp.eq.s32.totalorder %s38, 0
      %p294 = por %p292, %p293
      %s295 = ssub.s32 %s32, %s39
      %p296 = scmp.eq.s32.totalorder %s295, 0
      %s298 = sadd.s32 %s297, 1
      %s299 = scalar_select %p296, %s297, %s298
      %p302 = pneg %p296
      %p303 = scmp.eq.s32.totalorder %s32, 2
      %p304 = por %p302, %p303
      %p305 = scmp.ne.s32.totalorder %s297, %s300
      %p306 = scmp.eq.s32.totalorder %s32, 0
      %p307 = por %p305, %p306
      %p308 = scmp.ne.s32.totalorder %s297, %s300
      %p309 = scmp.eq.s32.totalorder %s37, 2
      %p310 = por %p308, %p309
      %p311 = scmp.ne.s32.totalorder %s300, %s301
      %p312 = scmp.eq.s32.totalorder %s37, 0
      %p313 = por %p311, %p312
      %p314 = scmp.ne.s32.totalorder %s300, %s301
      %p315 = scmp.eq.s32.totalorder %s38, 2
      %p316 = por %p314, %p315
      %p318 = scmp.ne.s32.totalorder %s301, %s317
      %p319 = scmp.eq.s32.totalorder %s38, 0
      %p320 = por %p318, %p319
      %s321 = ssub.s32 %s32, %s39
      %p322 = scmp.eq.s32.totalorder %s321, 0
      %s324 = sadd.s32 %s323, 1
      %s325 = scalar_select %p322, %s323, %s324
      %p328 = pneg %p322
      %p329 = scmp.eq.s32.totalorder %s32, 2
      %p330 = por %p328, %p329
      %p331 = scmp.ne.s32.totalorder %s323, %s326
      %p332 = scmp.eq.s32.totalorder %s32, 0
      %p333 = por %p331, %p332
      %p334 = scmp.ne.s32.totalorder %s323, %s326
      %p335 = scmp.eq.s32.totalorder %s37, 2
      %p336 = por %p334, %p335
      %p337 = scmp.ne.s32.totalorder %s326, %s327
      %p338 = scmp.eq.s32.totalorder %s37, 0
      %p339 = por %p337, %p338
      %p340 = scmp.ne.s32.totalorder %s326, %s327
      %p341 = scmp.eq.s32.totalorder %s38, 2
      %p342 = por %p340, %p341
      %p344 = scmp.ne.s32.totalorder %s327, %s343
      %p345 = scmp.eq.s32.totalorder %s38, 0
      %p346 = por %p344, %p345
      %s347 = ssub.s32 %s32, %s39
      %p348 = scmp.eq.s32.totalorder %s347, 0
      %s350 = sadd.s32 %s349, 1
      %s351 = scalar_select %p348, %s349, %s350
      %p354 = pneg %p348
      %p355 = scmp.eq.s32.totalorder %s32, 2
      %p356 = por %p354, %p355
      %p357 = scmp.ne.s32.totalorder %s349, %s352
      %p358 = scmp.eq.s32.totalorder %s32, 0
      %p359 = por %p357, %p358
      %p360 = scmp.ne.s32.totalorder %s349, %s352
      %p361 = scmp.eq.s32.totalorder %s37, 2
      %p362 = por %p360, %p361
      %p363 = scmp.ne.s32.totalorder %s352, %s353
      %p364 = scmp.eq.s32.totalorder %s37, 0
      %p365 = por %p363, %p364
      %p366 = scmp.ne.s32.totalorder %s352, %s353
      %p367 = scmp.eq.s32.totalorder %s38, 2
      %p368 = por %p366, %p367
      %p370 = scmp.ne.s32.totalorder %s353, %s369
      %p371 = scmp.eq.s32.totalorder %s38, 0
      %p372 = por %p370, %p371
      %s373 = ssub.s32 %s32, %s39
      %p374 = scmp.eq.s32.totalorder %s373, 0
      %s376 = sadd.s32 %s375, 1
      %s377 = scalar_select %p374, %s375, %s376
      %p380 = pneg %p374
      %p381 = scmp.eq.s32.totalorder %s32, 2
      %p382 = por %p380, %p381
      %p383 = scmp.ne.s32.totalorder %s375, %s378
      %p384 = scmp.eq.s32.totalorder %s32, 0
      %p385 = por %p383, %p384
      %p386 = scmp.ne.s32.totalorder %s375, %s378
      %p387 = scmp.eq.s32.totalorder %s37, 2
      %p388 = por %p386, %p387
      %p389 = scmp.ne.s32.totalorder %s378, %s379
      %p390 = scmp.eq.s32.totalorder %s37, 0
      %p391 = por %p389, %p390
      %p392 = scmp.ne.s32.totalorder %s378, %s379
      %p393 = scmp.eq.s32.totalorder %s38, 2
      %p394 = por %p392, %p393
      %p396 = scmp.ne.s32.totalorder %s379, %s395
      %p397 = scmp.eq.s32.totalorder %s38, 0
      %p398 = por %p396, %p397
      %p399 = scmp.le.s32.totalorder 1, %s32
      %p400 = scmp.lt.s32.totalorder %s32, 4
      %p401 = pnand %p399, %p400
      %p402 = pneg %p401
      // Predicated region
      $region9: #{relation_augmented_attention.1} parent=5 // pred_check
        _
      $region10: #{relation_augmented_attention.1} parent=5 // pred_check_branch
        %404 = sbr.rel (%p401) target = $region12
      $region11: #{relation_augmented_attention.1} parent=5 // pred_region
        %s405 = ssub.s32 %s32, 1
        // Predicated region
        $region13: #{relation_augmented_attention.1} parent=11 // pred_check
          %p406 = pneg %p53
        $region14: #{relation_augmented_attention.1} parent=11 // pred_check_branch
          %408 = sbr.rel (%p406) target = $region16
        $region15: #{relation_augmented_attention.1} parent=11 // pred_region
          _
        $region16: #{relation_augmented_attention.1} parent=11 // pred_fallthru
          _
      $region12: #{relation_augmented_attention.1} parent=5 // pred_fallthru
        _
      %p409 = scmp.lt.s32.totalorder %s32, 3
      // Predicated region
      $region17: #{relation_augmented_attention.1} parent=5 // pred_check
        %p410 = pneg %p409
      $region18: #{relation_augmented_attention.1} parent=5 // pred_check_branch
        %412 = sbr.rel (%p410) target = $region20
      $region19: #{relation_augmented_attention.1} parent=5 // pred_region
        // Predicated region
        $region21: #{relation_augmented_attention.1} parent=19 // pred_check
          %p413 = pneg %p73
        $region22: #{relation_augmented_attention.1} parent=19 // pred_check_branch
          %415 = sbr.rel (%p413) target = $region24
        $region23: #{relation_augmented_attention.1} parent=19 // pred_region
          %s416 = sand.u32 %s63, 1
          %s417 = scalar_lea.sflag [#allocation3], %s416
          %s418 = sand.u32 %s63, 1
          %s419 = smul.addr %s418, 256
          %s420 = scalar_lea.vmem [#allocation2], %s419
          %s422 = ssub.s32 4096, 4096
          %423 = vsyncadd %s417, %s422
          %s424 = smul.addr %s32, 32
          %s425 = smul.addr %s424, 128
          %s426 = scalar_lea.hbm %s1, %s425
          %s427 = sshll.u32 %s420, 4
          %s428 = int_to_ptr.vmem [resolvable:$true] %s427
          %433 = dma.hbm_to_vmem [thread:$0]  %s426, 4096, %s428, %s417, 256, 256, 16
        $region24: #{relation_augmented_attention.1} parent=19 // pred_fallthru
          _
        // Predicated region
        $region25: #{relation_augmented_attention.1} parent=19 // pred_check
          %p434 = pneg %p99
        $region26: #{relation_augmented_attention.1} parent=19 // pred_check_branch
          %436 = sbr.rel (%p434) target = $region28
        $region27: #{relation_augmented_attention.1} parent=19 // pred_region
          %s437 = sand.u32 %s32, 1
          %s438 = scalar_lea.sflag [#allocation5], %s437
          %s439 = sand.u32 %s89, 1
          %s440 = smul.addr %s439, 128
          %s441 = scalar_lea.vmem [#allocation4], %s440
          %s443 = ssub.s32 2048, 2048
          %444 = vsyncadd %s438, %s443
          %s445 = smul.addr %s32, 16
          %s446 = smul.addr %s445, 128
          %s447 = scalar_lea.hbm %s2, %s446
          %s448 = sshll.u32 %s441, 4
          %s449 = int_to_ptr.vmem [resolvable:$true] %s448
          %454 = dma.hbm_to_vmem [thread:$0]  %s447, 2048, %s449, %s438, 128, 128, 8
        $region28: #{relation_augmented_attention.1} parent=19 // pred_fallthru
          _
        // Predicated region
        $region29: #{relation_augmented_attention.1} parent=19 // pred_check
          %p455 = pneg %p125
        $region30: #{relation_augmented_attention.1} parent=19 // pred_check_branch
          %457 = sbr.rel (%p455) target = $region32
        $region31: #{relation_augmented_attention.1} parent=19 // pred_region
          %s458 = sand.u32 %s32, 1
          %s459 = scalar_lea.sflag [#allocation5], %s458
          %s460 = sand.u32 %s115, 1
          %s461 = smul.addr %s460, 128
          %s462 = scalar_lea.vmem [#allocation6], %s461
          %s464 = ssub.s32 2048, 2048
          %465 = vsyncadd %s459, %s464
          %s466 = smul.addr %s32, 16
          %s467 = smul.addr %s466, 128
          %s468 = scalar_lea.hbm %s3, %s467
          %s469 = sshll.u32 %s462, 4
          %s470 = int_to_ptr.vmem [resolvable:$true] %s469
          %475 = dma.hbm_to_vmem [thread:$0]  %s468, 2048, %s470, %s459, 128, 128, 8
        $region32: #{relation_augmented_attention.1} parent=19 // pred_fallthru
          _
        // Predicated region
        $region33: #{relation_augmented_attention.1} parent=19 // pred_check
          %p476 = pneg %p151
        $region34: #{relation_augmented_attention.1} parent=19 // pred_check_branch
          %478 = sbr.rel (%p476) target = $region36
        $region35: #{relation_augmented_attention.1} parent=19 // pred_region
          %p479 = scmp.lt.s32.totalorder %s32, 2
          %s480 = scalar_select %p479, %s32, 2
          %s481 = scalar_lea.vmem %s4, %s480
        $region36: #{relation_augmented_attention.1} parent=19 // pred_fallthru
          _
        // Predicated region
        $region37: #{relation_augmented_attention.1} parent=19 // pred_check
          %p482 = pneg %p177
        $region38: #{relation_augmented_attention.1} parent=19 // pred_check_branch
          %484 = sbr.rel (%p482) target = $region40
        $region39: #{relation_augmented_attention.1} parent=19 // pred_region
          %p485 = scmp.lt.s32.totalorder %s32, 2
          %s486 = scalar_select %p485, %s32, 2
          %s487 = scalar_lea.vmem %s5, %s486
        $region40: #{relation_augmented_attention.1} parent=19 // pred_fallthru
          _
        // Predicated region
        $region41: #{relation_augmented_attention.1} parent=19 // pred_check
          %p488 = pneg %p203
        $region42: #{relation_augmented_attention.1} parent=19 // pred_check_branch
          %490 = sbr.rel (%p488) target = $region44
        $region43: #{relation_augmented_attention.1} parent=19 // pred_region
          %s491 = sand.u32 %s32, 1
          %s492 = scalar_lea.sflag [#allocation8], %s491
          %s493 = sand.u32 %s193, 1
          %s494 = smul.addr %s493, 512
          %s495 = scalar_lea.vmem [#allocation7], %s494
          %s497 = ssub.s32 8192, 8192
          %498 = vsyncadd %s492, %s497
          %s499 = smul.addr %s32, 128
          %s500 = smul.addr %s499, 64
          %s501 = scalar_lea.hbm %s6, %s500
          %s502 = sshll.u32 %s495, 4
          %s503 = int_to_ptr.vmem [resolvable:$true] %s502
          %508 = dma.hbm_to_vmem [thread:$0]  %s501, 8192, %s503, %s492, 512, 512, 32
        $region44: #{relation_augmented_attention.1} parent=19 // pred_fallthru
          _
        // Predicated region
        $region45: #{relation_augmented_attention.1} parent=19 // pred_check
          %p509 = pneg %p229
        $region46: #{relation_augmented_attention.1} parent=19 // pred_check_branch
          %511 = sbr.rel (%p509) target = $region48
        $region47: #{relation_augmented_attention.1} parent=19 // pred_region
          %s512 = sand.u32 %s32, 1
          %s513 = scalar_lea.sflag [#allocation8], %s512
          %s514 = sand.u32 %s219, 1
          %s515 = smul.addr %s514, 8
          %s516 = scalar_lea.vmem [#allocation9], %s515
          %s518 = ssub.s32 128, 128
          %519 = vsyncadd %s513, %s518
          %s520 = smul.addr %s32, 8
          %s521 = smul.addr %s520, 16
          %s522 = scalar_lea.hbm %s7, %s521
          %s524 = sshll.u32 %s516, 4
          %s525 = int_to_ptr.vmem [resolvable:$true] %s524
          %527 = dma.hbm_to_vmem [thread:$0]  %s522, 128, %s525, %s513
        $region48: #{relation_augmented_attention.1} parent=19 // pred_fallthru
          _
        // Predicated region
        $region49: #{relation_augmented_attention.1} parent=19 // pred_check
          %p528 = pneg %p255
        $region50: #{relation_augmented_attention.1} parent=19 // pred_check_branch
          %530 = sbr.rel (%p528) target = $region52
        $region51: #{relation_augmented_attention.1} parent=19 // pred_region
          %s531 = sand.u32 %s245, 1
          %s532 = scalar_lea.sflag [#allocation11], %s531
          %s533 = sand.u32 %s245, 1
          %s534 = smul.addr %s533, 512
          %s535 = scalar_lea.vmem [#allocation10], %s534
          %s537 = ssub.s32 8192, 8192
          %538 = vsyncadd %s532, %s537
          %s539 = smul.addr %s32, 128
          %s540 = smul.addr %s539, 64
          %s541 = scalar_lea.hbm %s8, %s540
          %s542 = sshll.u32 %s535, 4
          %s543 = int_to_ptr.vmem [resolvable:$true] %s542
          %548 = dma.hbm_to_vmem [thread:$0]  %s541, 8192, %s543, %s532, 64, 64, 4
        $region52: #{relation_augmented_attention.1} parent=19 // pred_fallthru
          _
        // Predicated region
        $region53: #{relation_augmented_attention.1} parent=19 // pred_check
          %p549 = pneg %p281
        $region54: #{relation_augmented_attention.1} parent=19 // pred_check_branch
          %551 = sbr.rel (%p549) target = $region56
        $region55: #{relation_augmented_attention.1} parent=19 // pred_region
          %p552 = scmp.lt.s32.totalorder %s32, 2
          %s553 = scalar_select %p552, %s32, 2
          %s554 = scalar_lea.vmem %s9, %s553
        $region56: #{relation_augmented_attention.1} parent=19 // pred_fallthru
          _
        // Predicated region
        $region57: #{relation_augmented_attention.1} parent=19 // pred_check
          %p555 = pneg %p307
        $region58: #{relation_augmented_attention.1} parent=19 // pred_check_branch
          %557 = sbr.rel (%p555) target = $region60
        $region59: #{relation_augmented_attention.1} parent=19 // pred_region
          %p558 = scmp.lt.s32.totalorder %s32, 2
          %s559 = scalar_select %p558, %s32, 2
          %s560 = scalar_lea.vmem %s10, %s559
        $region60: #{relation_augmented_attention.1} parent=19 // pred_fallthru
          _
        // Predicated region
        $region61: #{relation_augmented_attention.1} parent=19 // pred_check
          %p561 = pneg %p333
        $region62: #{relation_augmented_attention.1} parent=19 // pred_check_branch
          %563 = sbr.rel (%p561) target = $region64
        $region63: #{relation_augmented_attention.1} parent=19 // pred_region
          %p564 = scmp.lt.s32.totalorder %s32, 2
          %s565 = scalar_select %p564, %s32, 2
          %s566 = scalar_lea.vmem %s11, %s565
        $region64: #{relation_augmented_attention.1} parent=19 // pred_fallthru
          _
      $region20: #{relation_augmented_attention.1} parent=5 // pred_fallthru
        _
      %p567 = scmp.le.s32.totalorder 1, %s32
      %p568 = scmp.lt.s32.totalorder %s32, 4
      %p569 = pnand %p567, %p568
      %p570 = pneg %p569
      // Predicated region
      $region65: #{relation_augmented_attention.1} parent=5 // pred_check
        _
      $region66: #{relation_augmented_attention.1} parent=5 // pred_check_branch
        %572 = sbr.rel (%p569) target = $region68
      $region67: #{relation_augmented_attention.1} parent=5 // pred_region
        %s573 = ssub.s32 %s32, 1
        %s574 = sand.u32 %s66, 1
        %s575 = scalar_lea.sflag [#allocation3], %s574
        %s576 = sand.u32 %s66, 1
        %s577 = smul.addr %s576, 256
        %s578 = scalar_lea.vmem [#allocation2], %s577
        // Predicated region
        $region69: #{relation_augmented_attention.1} parent=67 // pred_check
          %p579 = pneg %p79
        $region70: #{relation_augmented_attention.1} parent=67 // pred_check_branch
          %581 = sbr.rel (%p579) target = $region72
        $region71: #{relation_augmented_attention.1} parent=67 // pred_region
          %582 = dma.done %s575, 4096
        $region72: #{relation_augmented_attention.1} parent=67 // pred_fallthru
          _
        %s583 = sand.u32 %s37, 1
        %s584 = scalar_lea.sflag [#allocation5], %s583
        %s585 = sand.u32 %s92, 1
        %s586 = smul.addr %s585, 128
        %s587 = scalar_lea.vmem [#allocation4], %s586
        // Predicated region
        $region73: #{relation_augmented_attention.1} parent=67 // pred_check
          %p588 = pneg %p105
        $region74: #{relation_augmented_attention.1} parent=67 // pred_check_branch
          %590 = sbr.rel (%p588) target = $region76
        $region75: #{relation_augmented_attention.1} parent=67 // pred_region
          %591 = dma.done %s584, 2048
        $region76: #{relation_augmented_attention.1} parent=67 // pred_fallthru
          _
        %s592 = sand.u32 %s37, 1
        %s593 = scalar_lea.sflag [#allocation5], %s592
        %s594 = sand.u32 %s118, 1
        %s595 = smul.addr %s594, 128
        %s596 = scalar_lea.vmem [#allocation6], %s595
        // Predicated region
        $region77: #{relation_augmented_attention.1} parent=67 // pred_check
          %p597 = pneg %p131
        $region78: #{relation_augmented_attention.1} parent=67 // pred_check_branch
          %599 = sbr.rel (%p597) target = $region80
        $region79: #{relation_augmented_attention.1} parent=67 // pred_region
          %600 = dma.done %s593, 2048
        $region80: #{relation_augmented_attention.1} parent=67 // pred_fallthru
          _
        %s601 = sand.u32 %s37, 1
        %s602 = scalar_lea.sflag [#allocation8], %s601
        %s603 = sand.u32 %s196, 1
        %s604 = smul.addr %s603, 512
        %s605 = scalar_lea.vmem [#allocation7], %s604
        // Predicated region
        $region81: #{relation_augmented_attention.1} parent=67 // pred_check
          %p606 = pneg %p209
        $region82: #{relation_augmented_attention.1} parent=67 // pred_check_branch
          %608 = sbr.rel (%p606) target = $region84
        $region83: #{relation_augmented_attention.1} parent=67 // pred_region
          %609 = dma.done %s602, 8192
        $region84: #{relation_augmented_attention.1} parent=67 // pred_fallthru
          _
        %s610 = sand.u32 %s37, 1
        %s611 = scalar_lea.sflag [#allocation8], %s610
        %s612 = sand.u32 %s222, 1
        %s613 = smul.addr %s612, 8
        %s614 = scalar_lea.vmem [#allocation9], %s613
        // Predicated region
        $region85: #{relation_augmented_attention.1} parent=67 // pred_check
          %p615 = pneg %p235
        $region86: #{relation_augmented_attention.1} parent=67 // pred_check_branch
          %617 = sbr.rel (%p615) target = $region88
        $region87: #{relation_augmented_attention.1} parent=67 // pred_region
          %618 = dma.done %s611, 128
        $region88: #{relation_augmented_attention.1} parent=67 // pred_fallthru
          _
        %s619 = sand.u32 %s248, 1
        %s620 = scalar_lea.sflag [#allocation11], %s619
        %s621 = sand.u32 %s248, 1
        %s622 = smul.addr %s621, 512
        %s623 = scalar_lea.vmem [#allocation10], %s622
        // Predicated region
        $region89: #{relation_augmented_attention.1} parent=67 // pred_check
          %p624 = pneg %p261
        $region90: #{relation_augmented_attention.1} parent=67 // pred_check_branch
          %626 = sbr.rel (%p624) target = $region92
        $region91: #{relation_augmented_attention.1} parent=67 // pred_region
          %627 = dma.done %s620, 8192
        $region92: #{relation_augmented_attention.1} parent=67 // pred_fallthru
          _
        %p628 = pneg %p53
        %p629 = pneg %p50
        %s630 = sand.u32 %s66, 1
        %s631 = scalar_lea.sflag [#allocation3], %s630
        %s632 = sand.u32 %s66, 1
        %s633 = smul.addr %s632, 256
        %s634 = scalar_lea.vmem [#allocation2], %s633
        %p635 = pneg %p79
        %p636 = pneg %p76
        %s637 = sand.u32 %s37, 1
        %s638 = scalar_lea.sflag [#allocation5], %s637
        %s639 = sand.u32 %s92, 1
        %s640 = smul.addr %s639, 128
        %s641 = scalar_lea.vmem [#allocation4], %s640
        %p642 = pneg %p105
        %p643 = pneg %p102
        %s644 = sand.u32 %s37, 1
        %s645 = scalar_lea.sflag [#allocation5], %s644
        %s646 = sand.u32 %s118, 1
        %s647 = smul.addr %s646, 128
        %s648 = scalar_lea.vmem [#allocation6], %s647
        %p649 = pneg %p131
        %p650 = pneg %p128
        %p651 = scmp.lt.s32.totalorder %s37, 2
        %s652 = scalar_select %p651, %s37, 2
        %s653 = scalar_lea.vmem %s4, %s652
        %p654 = pneg %p157
        %p655 = pneg %p154
        %p656 = scmp.lt.s32.totalorder %s37, 2
        %s657 = scalar_select %p656, %s37, 2
        %s658 = scalar_lea.vmem %s5, %s657
        %p659 = pneg %p183
        %p660 = pneg %p180
        %s661 = sand.u32 %s37, 1
        %s662 = scalar_lea.sflag [#allocation8], %s661
        %s663 = sand.u32 %s196, 1
        %s664 = smul.addr %s663, 512
        %s665 = scalar_lea.vmem [#allocation7], %s664
        %p666 = pneg %p209
        %p667 = pneg %p206
        %s668 = sand.u32 %s37, 1
        %s669 = scalar_lea.sflag [#allocation8], %s668
        %s670 = sand.u32 %s222, 1
        %s671 = smul.addr %s670, 8
        %s672 = scalar_lea.vmem [#allocation9], %s671
        %p673 = pneg %p235
        %p674 = pneg %p232
        %s675 = sand.u32 %s248, 1
        %s676 = scalar_lea.sflag [#allocation11], %s675
        %s677 = sand.u32 %s248, 1
        %s678 = smul.addr %s677, 512
        %s679 = scalar_lea.vmem [#allocation10], %s678
        %p680 = pneg %p261
        %p681 = pneg %p258
        %p682 = scmp.lt.s32.totalorder %s37, 2
        %s683 = scalar_select %p682, %s37, 2
        %s684 = scalar_lea.vmem %s9, %s683
        %p685 = pneg %p287
        %p686 = pneg %p284
        %p687 = scmp.lt.s32.totalorder %s37, 2
        %s688 = scalar_select %p687, %s37, 2
        %s689 = scalar_lea.vmem %s10, %s688
        %p690 = pneg %p313
        %p691 = pneg %p310
        %p692 = scmp.lt.s32.totalorder %s37, 2
        %s693 = scalar_select %p692, %s37, 2
        %s694 = scalar_lea.vmem %s11, %s693
        %p695 = pneg %p339
        %p696 = pneg %p336
        %p697 = pneg %p365
        %p698 = pneg %p362
        %p699 = scmp.lt.s32.totalorder %s37, 2
        %s700 = scalar_select %p699, %s37, 2
        %s701 = smul.addr %s700, 8
        %s702 = scalar_lea.vmem %s12, %s701
        %p703 = pneg %p391
        %p704 = pneg %p388
        %p705 = scmp.lt.s32.totalorder %s37, 2
        %s706 = scalar_select %p705, %s37, 2
        %s707 = smul.addr %s706, 8
        %s708 = scalar_lea.vmem %s13, %s707
        %p709 = scmp.lt.s32.totalorder %s37, 2
        %s710 = scalar_select %p709, %s37, 2
        %s711 = scalar_lea.vmem %s4, %s710
        %p712 = scmp.lt.s32.totalorder %s37, 2
        %s713 = scalar_select %p712, %s37, 2
        %s714 = scalar_lea.vmem %s5, %s713
        %p715 = scmp.lt.s32.totalorder %s37, 2
        %s716 = scalar_select %p715, %s37, 2
        %s717 = scalar_lea.vmem %s9, %s716
        %p718 = scmp.lt.s32.totalorder %s37, 2
        %s719 = scalar_select %p718, %s37, 2
        %s720 = scalar_lea.vmem %s10, %s719
        %p721 = scmp.lt.s32.totalorder %s37, 2
        %s722 = scalar_select %p721, %s37, 2
        %s723 = scalar_lea.vmem %s11, %s722
        %p724 = scmp.lt.s32.totalorder %s37, 2
        %s725 = scalar_select %p724, %s37, 2
        %s726 = smul.addr %s725, 8
        %s727 = scalar_lea.vmem %s12, %s726
        %p728 = scmp.lt.s32.totalorder %s37, 2
        %s729 = scalar_select %p728, %s37, 2
        %s730 = smul.addr %s729, 8
        %s731 = scalar_lea.vmem %s13, %s730
        %v733 = vld [vmem:[%s0] sm:$0xff]
        %v734 = vld [vmem:[%s578] sm:$0xff]
        %v735 = vld [vmem:[%s578 + $0x8] sm:$0xff]
        %v736 = vld [vmem:[%s578 + $0x10] sm:$0xff]
        %v737 = vld [vmem:[%s578 + $0x18] sm:$0xff]
        %v738 = vld [vmem:[%s578 + $0x20] sm:$0xff]
        %v739 = vld [vmem:[%s578 + $0x28] sm:$0xff]
        %v740 = vld [vmem:[%s578 + $0x30] sm:$0xff]
        %v741 = vld [vmem:[%s578 + $0x38] sm:$0xff]
        %v742 = vld [vmem:[%s578 + $0x40] sm:$0xff]
        %v743 = vld [vmem:[%s578 + $0x48] sm:$0xff]
        %v744 = vld [vmem:[%s578 + $0x50] sm:$0xff]
        %v745 = vld [vmem:[%s578 + $0x58] sm:$0xff]
        %v746 = vld [vmem:[%s578 + $0x60] sm:$0xff]
        %v747 = vld [vmem:[%s578 + $0x68] sm:$0xff]
        %v748 = vld [vmem:[%s578 + $0x70] sm:$0xff]
        %v749 = vld [vmem:[%s578 + $0x78] sm:$0xff]
        %v750 = vld [vmem:[%s578 + $0x80] sm:$0xff]
        %v751 = vld [vmem:[%s578 + $0x88] sm:$0xff]
        %v752 = vld [vmem:[%s578 + $0x90] sm:$0xff]
        %v753 = vld [vmem:[%s578 + $0x98] sm:$0xff]
        %v754 = vld [vmem:[%s578 + $0xa0] sm:$0xff]
        %v755 = vld [vmem:[%s578 + $0xa8] sm:$0xff]
        %v756 = vld [vmem:[%s578 + $0xb0] sm:$0xff]
        %v757 = vld [vmem:[%s578 + $0xb8] sm:$0xff]
        %v758 = vld [vmem:[%s578 + $0xc0] sm:$0xff]
        %v759 = vld [vmem:[%s578 + $0xc8] sm:$0xff]
        %v760 = vld [vmem:[%s578 + $0xd0] sm:$0xff]
        %v761 = vld [vmem:[%s578 + $0xd8] sm:$0xff]
        %v762 = vld [vmem:[%s578 + $0xe0] sm:$0xff]
        %v763 = vld [vmem:[%s578 + $0xe8] sm:$0xff]
        %v764 = vld [vmem:[%s578 + $0xf0] sm:$0xff]
        %v765 = vld [vmem:[%s578 + $0xf8] sm:$0xff]
        %766 = vmatprep.subr.mxu0 %v765
        %767 = vmatpush1.msra.mxu0 %v764
        %768 = vmatprep.subr.mxu0 %v763
        %769 = vmatpush1.msra.mxu0 %v762
        %770 = vmatprep.subr.mxu0 %v761
        %771 = vmatpush1.msra.mxu0 %v760
        %772 = vmatprep.subr.mxu0 %v759
        %773 = vmatpush1.msra.mxu0 %v758
        %774 = vmatprep.subr.mxu0 %v757
        %775 = vmatpush1.msra.mxu0 %v756
        %776 = vmatprep.subr.mxu0 %v755
        %777 = vmatpush1.msra.mxu0 %v754
        %778 = vmatprep.subr.mxu0 %v753
        %779 = vmatpush1.msra.mxu0 %v752
        %780 = vmatprep.subr.mxu0 %v751
        %781 = vmatpush1.msra.mxu0 %v750
        %782 = vmatprep.subr.mxu0 %v749
        %783 = vmatpush1.msra.mxu0 %v748
        %784 = vmatprep.subr.mxu0 %v747
        %785 = vmatpush1.msra.mxu0 %v746
        %786 = vmatprep.subr.mxu0 %v745
        %787 = vmatpush1.msra.mxu0 %v744
        %788 = vmatprep.subr.mxu0 %v743
        %789 = vmatpush1.msra.mxu0 %v742
        %790 = vmatprep.subr.mxu0 %v741
        %791 = vmatpush1.msra.mxu0 %v740
        %792 = vmatprep.subr.mxu0 %v739
        %793 = vmatpush1.msra.mxu0 %v738
        %794 = vmatprep.subr.mxu0 %v737
        %795 = vmatpush1.msra.mxu0 %v736
        %796 = vmatprep.subr.mxu0 %v735
        %797 = vmatpush1.msra.mxu0 %v734
        %798 = vmatprep.subr.mxu0 0.0
        %799 = vmatpush2.msra.mxu0 0.0
        %800 = vmatprep.subr.mxu0 0.0
        %801 = vmatpush2.msra.mxu0 0.0
        %802 = vmatprep.subr.mxu0 0.0
        %803 = vmatpush2.msra.mxu0 0.0
        %804 = vmatprep.subr.mxu0 0.0
        %805 = vmatpush2.msra.mxu0 0.0
        %806 = vmatprep.subr.mxu0 0.0
        %807 = vmatpush2.msra.mxu0 0.0
        %808 = vmatprep.subr.mxu0 0.0
        %809 = vmatpush2.msra.mxu0 0.0
        %810 = vmatprep.subr.mxu0 0.0
        %811 = vmatpush2.msra.mxu0 0.0
        %812 = vmatprep.subr.mxu0 0.0
        %813 = vmatpush2.msra.mxu0 0.0
        %814 = vmatprep.subr.mxu0 0.0
        %815 = vmatpush2.msra.mxu0 0.0
        %816 = vmatprep.subr.mxu0 0.0
        %817 = vmatpush2.msra.mxu0 0.0
        %818 = vmatprep.subr.mxu0 0.0
        %819 = vmatpush2.msra.mxu0 0.0
        %820 = vmatprep.subr.mxu0 0.0
        %821 = vmatpush2.msra.mxu0 0.0
        %822 = vmatprep.subr.mxu0 0.0
        %823 = vmatpush2.msra.mxu0 0.0
        %824 = vmatprep.subr.mxu0 0.0
        %825 = vmatpush2.msra.mxu0 0.0
        %826 = vmatprep.subr.mxu0 0.0
        %827 = vmatpush2.msra.mxu0 0.0
        %828 = vmatprep.subr.mxu0 0.0
        %829 = vmatpush2.msra.mxu0 0.0
        %830 = vmatprep.mubr.f32.mxu0 0.0
        %831 = vmatmul.mubr.f32.gmra.mxu0 %v733
        %v832 = vpop.f32.mrf.mxu0
        %v833 = vadd.f32 0.0, %v832
        %v834 = vpop.f32.mrf.mxu0
        %v835 = vadd.f32 0.0, %v834
        %836 = vdwg.mxu0
        %837 = vst [vmem:[%s727] sm:$0xff] %v833
        %v838 = vld [vmem:[%s714] sm:$0x1]
        %v840 = vlaneseq
        %v841 = vshrl.u32 %v840, 7
        %v842 = vsub.s32 0, %v841
        %v843 = vrot.slane %v838, %v842
        %v845 = vadd.f32 %v833, %v843
        %846 = vmax.xlane.f32.xlu0 %v845
        %v847 = vpop.xlane.xlu0 %846
        %v848 = vsub.f32 %v845, %v847
        %v849 = vmul.f32 %v848, 1.442695
        %v850 = vpow.pop %v849
        %851 = vadd.xlane.f32.xlu0 %v850
        %v852 = vpop.xlane.xlu0 %851
        %v853 = vrcp.pop %v852
        %v854 = vmul.f32 %v850, %v853
        %v855 = vld [vmem:[%s587] sm:$0xff]
        %v856 = vld [vmem:[%s587 + $0x8] sm:$0xff]
        %v857 = vld [vmem:[%s587 + $0x10] sm:$0xff]
        %v858 = vld [vmem:[%s587 + $0x18] sm:$0xff]
        %v859 = vld [vmem:[%s587 + $0x20] sm:$0xff]
        %v860 = vld [vmem:[%s587 + $0x28] sm:$0xff]
        %v861 = vld [vmem:[%s587 + $0x30] sm:$0xff]
        %v862 = vld [vmem:[%s587 + $0x38] sm:$0xff]
        %v863 = vld [vmem:[%s587 + $0x40] sm:$0xff]
        %v864 = vld [vmem:[%s587 + $0x48] sm:$0xff]
        %v865 = vld [vmem:[%s587 + $0x50] sm:$0xff]
        %v866 = vld [vmem:[%s587 + $0x58] sm:$0xff]
        %v867 = vld [vmem:[%s587 + $0x60] sm:$0xff]
        %v868 = vld [vmem:[%s587 + $0x68] sm:$0xff]
        %v869 = vld [vmem:[%s587 + $0x70] sm:$0xff]
        %v870 = vld [vmem:[%s587 + $0x78] sm:$0xff]
        %871 = vmatprep.subr.mxu0 0.0
        %872 = vmatpush1.msra.mxu0 %v870
        %873 = vmatprep.subr.mxu0 0.0
        %874 = vmatpush1.msra.mxu0 %v869
        %875 = vmatprep.subr.mxu0 0.0
        %876 = vmatpush1.msra.mxu0 %v868
        %877 = vmatprep.subr.mxu0 0.0
        %878 = vmatpush1.msra.mxu0 %v867
        %879 = vmatprep.subr.mxu0 0.0
        %880 = vmatpush1.msra.mxu0 %v866
        %881 = vmatprep.subr.mxu0 0.0
        %882 = vmatpush1.msra.mxu0 %v865
        %883 = vmatprep.subr.mxu0 0.0
        %884 = vmatpush1.msra.mxu0 %v864
        %885 = vmatprep.subr.mxu0 0.0
        %886 = vmatpush1.msra.mxu0 %v863
        %887 = vmatprep.subr.mxu0 0.0
        %888 = vmatpush1.msra.mxu0 %v862
        %889 = vmatprep.subr.mxu0 0.0
        %890 = vmatpush1.msra.mxu0 %v861
        %891 = vmatprep.subr.mxu0 0.0
        %892 = vmatpush1.msra.mxu0 %v860
        %893 = vmatprep.subr.mxu0 0.0
        %894 = vmatpush1.msra.mxu0 %v859
        %895 = vmatprep.subr.mxu0 0.0
        %896 = vmatpush1.msra.mxu0 %v858
        %897 = vmatprep.subr.mxu0 0.0
        %898 = vmatpush1.msra.mxu0 %v857
        %899 = vmatprep.subr.mxu0 0.0
        %900 = vmatpush1.msra.mxu0 %v856
        %901 = vmatprep.subr.mxu0 0.0
        %902 = vmatpush1.msra.mxu0 %v855
        %903 = vmatprep.subr.mxu0 0.0
        %904 = vmatpush2.msra.mxu0 0.0
        %905 = vmatprep.subr.mxu0 0.0
        %906 = vmatpush2.msra.mxu0 0.0
        %907 = vmatprep.subr.mxu0 0.0
        %908 = vmatpush2.msra.mxu0 0.0
        %909 = vmatprep.subr.mxu0 0.0
        %910 = vmatpush2.msra.mxu0 0.0
        %911 = vmatprep.subr.mxu0 0.0
        %912 = vmatpush2.msra.mxu0 0.0
        %913 = vmatprep.subr.mxu0 0.0
        %914 = vmatpush2.msra.mxu0 0.0
        %915 = vmatprep.subr.mxu0 0.0
        %916 = vmatpush2.msra.mxu0 0.0
        %917 = vmatprep.subr.mxu0 0.0
        %918 = vmatpush2.msra.mxu0 0.0
        %919 = vmatprep.subr.mxu0 0.0
        %920 = vmatpush2.msra.mxu0 0.0
        %921 = vmatprep.subr.mxu0 0.0
        %922 = vmatpush2.msra.mxu0 0.0
        %923 = vmatprep.subr.mxu0 0.0
        %924 = vmatpush2.msra.mxu0 0.0
        %925 = vmatprep.subr.mxu0 0.0
        %926 = vmatpush2.msra.mxu0 0.0
        %927 = vmatprep.subr.mxu0 0.0
        %928 = vmatpush2.msra.mxu0 0.0
        %929 = vmatprep.subr.mxu0 0.0
        %930 = vmatpush2.msra.mxu0 0.0
        %931 = vmatprep.subr.mxu0 0.0
        %932 = vmatpush2.msra.mxu0 0.0
        %933 = vmatprep.subr.mxu0 0.0
        %934 = vmatpush2.msra.mxu0 0.0
        %935 = vmatprep.mubr.f32.mxu0 0.0
        %936 = vmatmul.mubr.f32.gmra.mxu0 %v854
        %v937 = vpop.f32.mrf.mxu0
        %v938 = vadd.f32 0.0, %v937
        %v939 = vpop.f32.mrf.mxu0
        %940 = vdwg.mxu0
        %v941 = vld [vmem:[%s596] sm:$0xff]
        %v942 = vld [vmem:[%s596 + $0x8] sm:$0xff]
        %v943 = vld [vmem:[%s596 + $0x10] sm:$0xff]
        %v944 = vld [vmem:[%s596 + $0x18] sm:$0xff]
        %v945 = vld [vmem:[%s596 + $0x20] sm:$0xff]
        %v946 = vld [vmem:[%s596 + $0x28] sm:$0xff]
        %v947 = vld [vmem:[%s596 + $0x30] sm:$0xff]
        %v948 = vld [vmem:[%s596 + $0x38] sm:$0xff]
        %v949 = vld [vmem:[%s596 + $0x40] sm:$0xff]
        %v950 = vld [vmem:[%s596 + $0x48] sm:$0xff]
        %v951 = vld [vmem:[%s596 + $0x50] sm:$0xff]
        %v952 = vld [vmem:[%s596 + $0x58] sm:$0xff]
        %v953 = vld [vmem:[%s596 + $0x60] sm:$0xff]
        %v954 = vld [vmem:[%s596 + $0x68] sm:$0xff]
        %v955 = vld [vmem:[%s596 + $0x70] sm:$0xff]
        %v956 = vld [vmem:[%s596 + $0x78] sm:$0xff]
        %957 = vmatprep.subr.mxu0 0.0
        %958 = vmatpush1.msra.mxu0 %v956
        %959 = vmatprep.subr.mxu0 0.0
        %960 = vmatpush1.msra.mxu0 %v955
        %961 = vmatprep.subr.mxu0 0.0
        %962 = vmatpush1.msra.mxu0 %v954
        %963 = vmatprep.subr.mxu0 0.0
        %964 = vmatpush1.msra.mxu0 %v953
        %965 = vmatprep.subr.mxu0 0.0
        %966 = vmatpush1.msra.mxu0 %v952
        %967 = vmatprep.subr.mxu0 0.0
        %968 = vmatpush1.msra.mxu0 %v951
        %969 = vmatprep.subr.mxu0 0.0
        %970 = vmatpush1.msra.mxu0 %v950
        %971 = vmatprep.subr.mxu0 0.0
        %972 = vmatpush1.msra.mxu0 %v949
        %973 = vmatprep.subr.mxu0 0.0
        %974 = vmatpush1.msra.mxu0 %v948
        %975 = vmatprep.subr.mxu0 0.0
        %976 = vmatpush1.msra.mxu0 %v947
        %977 = vmatprep.subr.mxu0 0.0
        %978 = vmatpush1.msra.mxu0 %v946
        %979 = vmatprep.subr.mxu0 0.0
        %980 = vmatpush1.msra.mxu0 %v945
        %981 = vmatprep.subr.mxu0 0.0
        %982 = vmatpush1.msra.mxu0 %v944
        %983 = vmatprep.subr.mxu0 0.0
        %984 = vmatpush1.msra.mxu0 %v943
        %985 = vmatprep.subr.mxu0 0.0
        %986 = vmatpush1.msra.mxu0 %v942
        %987 = vmatprep.subr.mxu0 0.0
        %988 = vmatpush1.msra.mxu0 %v941
        %989 = vmatprep.subr.mxu0 0.0
        %990 = vmatpush2.msra.mxu0 0.0
        %991 = vmatprep.subr.mxu0 0.0
        %992 = vmatpush2.msra.mxu0 0.0
        %993 = vmatprep.subr.mxu0 0.0
        %994 = vmatpush2.msra.mxu0 0.0
        %995 = vmatprep.subr.mxu0 0.0
        %996 = vmatpush2.msra.mxu0 0.0
        %997 = vmatprep.subr.mxu0 0.0
        %998 = vmatpush2.msra.mxu0 0.0
        %999 = vmatprep.subr.mxu0 0.0
        %1000 = vmatpush2.msra.mxu0 0.0
        %1001 = vmatprep.subr.mxu0 0.0
        %1002 = vmatpush2.msra.mxu0 0.0
        %1003 = vmatprep.subr.mxu0 0.0
        %1004 = vmatpush2.msra.mxu0 0.0
        %1005 = vmatprep.subr.mxu0 0.0
        %1006 = vmatpush2.msra.mxu0 0.0
        %1007 = vmatprep.subr.mxu0 0.0
        %1008 = vmatpush2.msra.mxu0 0.0
        %1009 = vmatprep.subr.mxu0 0.0
        %1010 = vmatpush2.msra.mxu0 0.0
        %1011 = vmatprep.subr.mxu0 0.0
        %1012 = vmatpush2.msra.mxu0 0.0
        %1013 = vmatprep.subr.mxu0 0.0
        %1014 = vmatpush2.msra.mxu0 0.0
        %1015 = vmatprep.subr.mxu0 0.0
        %1016 = vmatpush2.msra.mxu0 0.0
        %1017 = vmatprep.subr.mxu0 0.0
        %1018 = vmatpush2.msra.mxu0 0.0
        %1019 = vmatprep.subr.mxu0 0.0
        %1020 = vmatpush2.msra.mxu0 0.0
        %1021 = vmatprep.mubr.f32.mxu0 0.0
        %1022 = vmatmul.mubr.f32.gmra.mxu0 %v938
        %v1023 = vpop.f32.mrf.mxu0
        %v1024 = vadd.f32 0.0, %v1023
        %v1025 = vpop.f32.mrf.mxu0
        %1026 = vdwg.mxu0
        %v1027 = vadd.f32 %v835, %v1024
        %v1028 = vld [vmem:[%s711] sm:$0x1]
        %v1030 = vlaneseq
        %v1031 = vshrl.u32 %v1030, 7
        %v1032 = vsub.s32 0, %v1031
        %v1033 = vrot.slane %v1028, %v1032
        %v1035 = vadd.f32 %v1027, %v1033
        %v1036 = vsub.f32 0.0, %v1035
        %v1037 = vmul.f32 %v1036, 1.442695
        %v1038 = vpow.pop %v1037
        %v1039 = vadd.f32 %v1038, 1.0
        %v1040 = vrcp.pop %v1039
        %v1041 = vmul.f32 %v1040, %v733
        %v1042 = vsub.f32 1.0, %v1040
        %v1043 = vmul.f32 %v1042, %v938
        %v1044 = vadd.f32 %v1041, %v1043
        %v1045 = vpack.c.bf16 %v1044, %v1044
        %v1046 = vld [vmem:[%s605] sm:$0xff]
        %v1047 = vld [vmem:[%s605 + $0x8] sm:$0xff]
        %v1048 = vld [vmem:[%s605 + $0x10] sm:$0xff]
        %v1049 = vld [vmem:[%s605 + $0x18] sm:$0xff]
        %v1050 = vld [vmem:[%s605 + $0x20] sm:$0xff]
        %v1051 = vld [vmem:[%s605 + $0x28] sm:$0xff]
        %v1052 = vld [vmem:[%s605 + $0x30] sm:$0xff]
        %v1053 = vld [vmem:[%s605 + $0x38] sm:$0xff]
        %v1054 = vld [vmem:[%s605 + $0x40] sm:$0xff]
        %v1055 = vld [vmem:[%s605 + $0x48] sm:$0xff]
        %v1056 = vld [vmem:[%s605 + $0x50] sm:$0xff]
        %v1057 = vld [vmem:[%s605 + $0x58] sm:$0xff]
        %v1058 = vld [vmem:[%s605 + $0x60] sm:$0xff]
        %v1059 = vld [vmem:[%s605 + $0x68] sm:$0xff]
        %v1060 = vld [vmem:[%s605 + $0x70] sm:$0xff]
        %v1061 = vld [vmem:[%s605 + $0x78] sm:$0xff]
        %v1062 = vld [vmem:[%s605 + $0x80] sm:$0xff]
        %v1063 = vld [vmem:[%s605 + $0x88] sm:$0xff]
        %v1064 = vld [vmem:[%s605 + $0x90] sm:$0xff]
        %v1065 = vld [vmem:[%s605 + $0x98] sm:$0xff]
        %v1066 = vld [vmem:[%s605 + $0xa0] sm:$0xff]
        %v1067 = vld [vmem:[%s605 + $0xa8] sm:$0xff]
        %v1068 = vld [vmem:[%s605 + $0xb0] sm:$0xff]
        %v1069 = vld [vmem:[%s605 + $0xb8] sm:$0xff]
        %v1070 = vld [vmem:[%s605 + $0xc0] sm:$0xff]
        %v1071 = vld [vmem:[%s605 + $0xc8] sm:$0xff]
        %v1072 = vld [vmem:[%s605 + $0xd0] sm:$0xff]
        %v1073 = vld [vmem:[%s605 + $0xd8] sm:$0xff]
        %v1074 = vld [vmem:[%s605 + $0xe0] sm:$0xff]
        %v1075 = vld [vmem:[%s605 + $0xe8] sm:$0xff]
        %v1076 = vld [vmem:[%s605 + $0xf0] sm:$0xff]
        %v1077 = vld [vmem:[%s605 + $0xf8] sm:$0xff]
        %v1078 = vld [vmem:[%s605 + $0x100] sm:$0xff]
        %v1079 = vld [vmem:[%s605 + $0x108] sm:$0xff]
        %v1080 = vld [vmem:[%s605 + $0x110] sm:$0xff]
        %v1081 = vld [vmem:[%s605 + $0x118] sm:$0xff]
        %v1082 = vld [vmem:[%s605 + $0x120] sm:$0xff]
        %v1083 = vld [vmem:[%s605 + $0x128] sm:$0xff]
        %v1084 = vld [vmem:[%s605 + $0x130] sm:$0xff]
        %v1085 = vld [vmem:[%s605 + $0x138] sm:$0xff]
        %v1086 = vld [vmem:[%s605 + $0x140] sm:$0xff]
        %v1087 = vld [vmem:[%s605 + $0x148] sm:$0xff]
        %v1088 = vld [vmem:[%s605 + $0x150] sm:$0xff]
        %v1089 = vld [vmem:[%s605 + $0x158] sm:$0xff]
        %v1090 = vld [vmem:[%s605 + $0x160] sm:$0xff]
        %v1091 = vld [vmem:[%s605 + $0x168] sm:$0xff]
        %v1092 = vld [vmem:[%s605 + $0x170] sm:$0xff]
        %v1093 = vld [vmem:[%s605 + $0x178] sm:$0xff]
        %v1094 = vld [vmem:[%s605 + $0x180] sm:$0xff]
        %v1095 = vld [vmem:[%s605 + $0x188] sm:$0xff]
        %v1096 = vld [vmem:[%s605 + $0x190] sm:$0xff]
        %v1097 = vld [vmem:[%s605 + $0x198] sm:$0xff]
        %v1098 = vld [vmem:[%s605 + $0x1a0] sm:$0xff]
        %v1099 = vld [vmem:[%s605 + $0x1a8] sm:$0xff]
        %v1100 = vld [vmem:[%s605 + $0x1b0] sm:$0xff]
        %v1101 = vld [vmem:[%s605 + $0x1b8] sm:$0xff]
        %v1102 = vld [vmem:[%s605 + $0x1c0] sm:$0xff]
        %v1103 = vld [vmem:[%s605 + $0x1c8] sm:$0xff]
        %v1104 = vld [vmem:[%s605 + $0x1d0] sm:$0xff]
        %v1105 = vld [vmem:[%s605 + $0x1d8] sm:$0xff]
        %v1106 = vld [vmem:[%s605 + $0x1e0] sm:$0xff]
        %v1107 = vld [vmem:[%s605 + $0x1e8] sm:$0xff]
        %v1108 = vld [vmem:[%s605 + $0x1f0] sm:$0xff]
        %v1109 = vld [vmem:[%s605 + $0x1f8] sm:$0xff]
        %v1110 = vld [vmem:[%s614] sm:$0xff]
        %v1112 = vlaneseq
        %v1113 = vshrl.u32 %v1112, 7
        %v1114 = vsub.s32 0, %v1113
        %v1115 = vrot.slane %v1110, %v1114
        %v1116 = vlaneseq
        %v1117 = vshrl.u32 %v1116, 7
        %v1118 = vsub.s32 1, %v1117
        %v1119 = vrot.slane %v1110, %v1118
        %v1120 = vlaneseq
        %v1121 = vshrl.u32 %v1120, 7
        %v1122 = vsub.s32 2, %v1121
        %v1123 = vrot.slane %v1110, %v1122
        %v1124 = vlaneseq
        %v1125 = vshrl.u32 %v1124, 7
        %v1126 = vsub.s32 3, %v1125
        %v1127 = vrot.slane %v1110, %v1126
        %v1128 = vlaneseq
        %v1129 = vshrl.u32 %v1128, 7
        %v1130 = vsub.s32 4, %v1129
        %v1131 = vrot.slane %v1110, %v1130
        %v1132 = vlaneseq
        %v1133 = vshrl.u32 %v1132, 7
        %v1134 = vsub.s32 5, %v1133
        %v1135 = vrot.slane %v1110, %v1134
        %v1136 = vlaneseq
        %v1137 = vshrl.u32 %v1136, 7
        %v1138 = vsub.s32 6, %v1137
        %v1139 = vrot.slane %v1110, %v1138
        %v1140 = vlaneseq
        %v1141 = vshrl.u32 %v1140, 7
        %v1142 = vsub.s32 7, %v1141
        %v1143 = vrot.slane %v1110, %v1142
        %v1216 = vunpack.c.l.b16 %v1046
        %v1217 = vunpack.c.h.b16 %v1046
        %v1218 = vunpack.c.l.b16 %v1047
        %v1219 = vunpack.c.h.b16 %v1047
        %v1220 = vunpack.c.l.b16 %v1048
        %v1221 = vunpack.c.h.b16 %v1048
        %v1222 = vunpack.c.l.b16 %v1049
        %v1223 = vunpack.c.h.b16 %v1049
        %v1224 = vunpack.c.l.b16 %v1050
        %v1225 = vunpack.c.h.b16 %v1050
        %v1226 = vunpack.c.l.b16 %v1051
        %v1227 = vunpack.c.h.b16 %v1051
        %v1228 = vunpack.c.l.b16 %v1052
        %v1229 = vunpack.c.h.b16 %v1052
        %v1230 = vunpack.c.l.b16 %v1053
        %v1231 = vunpack.c.h.b16 %v1053
        %v1232 = vunpack.c.l.b16 %v1054
        %v1233 = vunpack.c.h.b16 %v1054
        %v1234 = vunpack.c.l.b16 %v1055
        %v1235 = vunpack.c.h.b16 %v1055
        %v1236 = vunpack.c.l.b16 %v1056
        %v1237 = vunpack.c.h.b16 %v1056
        %v1238 = vunpack.c.l.b16 %v1057
        %v1239 = vunpack.c.h.b16 %v1057
        %v1240 = vunpack.c.l.b16 %v1058
        %v1241 = vunpack.c.h.b16 %v1058
        %v1242 = vunpack.c.l.b16 %v1059
        %v1243 = vunpack.c.h.b16 %v1059
        %v1244 = vunpack.c.l.b16 %v1060
        %v1245 = vunpack.c.h.b16 %v1060
        %v1246 = vunpack.c.l.b16 %v1061
        %v1247 = vunpack.c.h.b16 %v1061
        %v1248 = vunpack.c.l.b16 %v1062
        %v1249 = vunpack.c.h.b16 %v1062
        %v1250 = vunpack.c.l.b16 %v1063
        %v1251 = vunpack.c.h.b16 %v1063
        %v1252 = vunpack.c.l.b16 %v1064
        %v1253 = vunpack.c.h.b16 %v1064
        %v1254 = vunpack.c.l.b16 %v1065
        %v1255 = vunpack.c.h.b16 %v1065
        %v1256 = vunpack.c.l.b16 %v1066
        %v1257 = vunpack.c.h.b16 %v1066
        %v1258 = vunpack.c.l.b16 %v1067
        %v1259 = vunpack.c.h.b16 %v1067
        %v1260 = vunpack.c.l.b16 %v1068
        %v1261 = vunpack.c.h.b16 %v1068
        %v1262 = vunpack.c.l.b16 %v1069
        %v1263 = vunpack.c.h.b16 %v1069
        %v1264 = vunpack.c.l.b16 %v1070
        %v1265 = vunpack.c.h.b16 %v1070
        %v1266 = vunpack.c.l.b16 %v1071
        %v1267 = vunpack.c.h.b16 %v1071
        %v1268 = vunpack.c.l.b16 %v1072
        %v1269 = vunpack.c.h.b16 %v1072
        %v1270 = vunpack.c.l.b16 %v1073
        %v1271 = vunpack.c.h.b16 %v1073
        %v1272 = vunpack.c.l.b16 %v1074
        %v1273 = vunpack.c.h.b16 %v1074
        %v1274 = vunpack.c.l.b16 %v1075
        %v1275 = vunpack.c.h.b16 %v1075
        %v1276 = vunpack.c.l.b16 %v1076
        %v1277 = vunpack.c.h.b16 %v1076
        %v1278 = vunpack.c.l.b16 %v1077
        %v1279 = vunpack.c.h.b16 %v1077
        %v1280 = vunpack.c.l.b16 %v1078
        %v1281 = vunpack.c.h.b16 %v1078
        %v1282 = vunpack.c.l.b16 %v1079
        %v1283 = vunpack.c.h.b16 %v1079
        %v1284 = vunpack.c.l.b16 %v1080
        %v1285 = vunpack.c.h.b16 %v1080
        %v1286 = vunpack.c.l.b16 %v1081
        %v1287 = vunpack.c.h.b16 %v1081
        %v1288 = vunpack.c.l.b16 %v1082
        %v1289 = vunpack.c.h.b16 %v1082
        %v1290 = vunpack.c.l.b16 %v1083
        %v1291 = vunpack.c.h.b16 %v1083
        %v1292 = vunpack.c.l.b16 %v1084
        %v1293 = vunpack.c.h.b16 %v1084
        %v1294 = vunpack.c.l.b16 %v1085
        %v1295 = vunpack.c.h.b16 %v1085
        %v1296 = vunpack.c.l.b16 %v1086
        %v1297 = vunpack.c.h.b16 %v1086
        %v1298 = vunpack.c.l.b16 %v1087
        %v1299 = vunpack.c.h.b16 %v1087
        %v1300 = vunpack.c.l.b16 %v1088
        %v1301 = vunpack.c.h.b16 %v1088
        %v1302 = vunpack.c.l.b16 %v1089
        %v1303 = vunpack.c.h.b16 %v1089
        %v1304 = vunpack.c.l.b16 %v1090
        %v1305 = vunpack.c.h.b16 %v1090
        %v1306 = vunpack.c.l.b16 %v1091
        %v1307 = vunpack.c.h.b16 %v1091
        %v1308 = vunpack.c.l.b16 %v1092
        %v1309 = vunpack.c.h.b16 %v1092
        %v1310 = vunpack.c.l.b16 %v1093
        %v1311 = vunpack.c.h.b16 %v1093
        %v1312 = vunpack.c.l.b16 %v1094
        %v1313 = vunpack.c.h.b16 %v1094
        %v1314 = vunpack.c.l.b16 %v1095
        %v1315 = vunpack.c.h.b16 %v1095
        %v1316 = vunpack.c.l.b16 %v1096
        %v1317 = vunpack.c.h.b16 %v1096
        %v1318 = vunpack.c.l.b16 %v1097
        %v1319 = vunpack.c.h.b16 %v1097
        %v1320 = vunpack.c.l.b16 %v1098
        %v1321 = vunpack.c.h.b16 %v1098
        %v1322 = vunpack.c.l.b16 %v1099
        %v1323 = vunpack.c.h.b16 %v1099
        %v1324 = vunpack.c.l.b16 %v1100
        %v1325 = vunpack.c.h.b16 %v1100
        %v1326 = vunpack.c.l.b16 %v1101
        %v1327 = vunpack.c.h.b16 %v1101
        %v1328 = vunpack.c.l.b16 %v1102
        %v1329 = vunpack.c.h.b16 %v1102
        %v1330 = vunpack.c.l.b16 %v1103
        %v1331 = vunpack.c.h.b16 %v1103
        %v1332 = vunpack.c.l.b16 %v1104
        %v1333 = vunpack.c.h.b16 %v1104
        %v1334 = vunpack.c.l.b16 %v1105
        %v1335 = vunpack.c.h.b16 %v1105
        %v1336 = vunpack.c.l.b16 %v1106
        %v1337 = vunpack.c.h.b16 %v1106
        %v1338 = vunpack.c.l.b16 %v1107
        %v1339 = vunpack.c.h.b16 %v1107
        %v1340 = vunpack.c.l.b16 %v1108
        %v1341 = vunpack.c.h.b16 %v1108
        %v1342 = vunpack.c.l.b16 %v1109
        %v1343 = vunpack.c.h.b16 %v1109
        %v1344 = vpack.c.b16 %v1224, %v1216
        %v1345 = vpack.c.b16 %v1225, %v1217
        %v1346 = vpack.c.b16 %v1226, %v1218
        %v1347 = vpack.c.b16 %v1227, %v1219
        %v1348 = vpack.c.b16 %v1228, %v1220
        %v1349 = vpack.c.b16 %v1229, %v1221
        %v1350 = vpack.c.b16 %v1230, %v1222
        %v1351 = vpack.c.b16 %v1231, %v1223
        %v1352 = vpack.c.b16 %v1240, %v1232
        %v1353 = vpack.c.b16 %v1241, %v1233
        %v1354 = vpack.c.b16 %v1242, %v1234
        %v1355 = vpack.c.b16 %v1243, %v1235
        %v1356 = vpack.c.b16 %v1244, %v1236
        %v1357 = vpack.c.b16 %v1245, %v1237
        %v1358 = vpack.c.b16 %v1246, %v1238
        %v1359 = vpack.c.b16 %v1247, %v1239
        %v1360 = vpack.c.b16 %v1256, %v1248
        %v1361 = vpack.c.b16 %v1257, %v1249
        %v1362 = vpack.c.b16 %v1258, %v1250
        %v1363 = vpack.c.b16 %v1259, %v1251
        %v1364 = vpack.c.b16 %v1260, %v1252
        %v1365 = vpack.c.b16 %v1261, %v1253
        %v1366 = vpack.c.b16 %v1262, %v1254
        %v1367 = vpack.c.b16 %v1263, %v1255
        %v1368 = vpack.c.b16 %v1272, %v1264
        %v1369 = vpack.c.b16 %v1273, %v1265
        %v1370 = vpack.c.b16 %v1274, %v1266
        %v1371 = vpack.c.b16 %v1275, %v1267
        %v1372 = vpack.c.b16 %v1276, %v1268
        %v1373 = vpack.c.b16 %v1277, %v1269
        %v1374 = vpack.c.b16 %v1278, %v1270
        %v1375 = vpack.c.b16 %v1279, %v1271
        %v1376 = vpack.c.b16 %v1288, %v1280
        %v1377 = vpack.c.b16 %v1289, %v1281
        %v1378 = vpack.c.b16 %v1290, %v1282
        %v1379 = vpack.c.b16 %v1291, %v1283
        %v1380 = vpack.c.b16 %v1292, %v1284
        %v1381 = vpack.c.b16 %v1293, %v1285
        %v1382 = vpack.c.b16 %v1294, %v1286
        %v1383 = vpack.c.b16 %v1295, %v1287
        %v1384 = vpack.c.b16 %v1304, %v1296
        %v1385 = vpack.c.b16 %v1305, %v1297
        %v1386 = vpack.c.b16 %v1306, %v1298
        %v1387 = vpack.c.b16 %v1307, %v1299
        %v1388 = vpack.c.b16 %v1308, %v1300
        %v1389 = vpack.c.b16 %v1309, %v1301
        %v1390 = vpack.c.b16 %v1310, %v1302
        %v1391 = vpack.c.b16 %v1311, %v1303
        %v1392 = vpack.c.b16 %v1320, %v1312
        %v1393 = vpack.c.b16 %v1321, %v1313
        %v1394 = vpack.c.b16 %v1322, %v1314
        %v1395 = vpack.c.b16 %v1323, %v1315
        %v1396 = vpack.c.b16 %v1324, %v1316
        %v1397 = vpack.c.b16 %v1325, %v1317
        %v1398 = vpack.c.b16 %v1326, %v1318
        %v1399 = vpack.c.b16 %v1327, %v1319
        %v1400 = vpack.c.b16 %v1336, %v1328
        %v1401 = vpack.c.b16 %v1337, %v1329
        %v1402 = vpack.c.b16 %v1338, %v1330
        %v1403 = vpack.c.b16 %v1339, %v1331
        %v1404 = vpack.c.b16 %v1340, %v1332
        %v1405 = vpack.c.b16 %v1341, %v1333
        %v1406 = vpack.c.b16 %v1342, %v1334
        %v1407 = vpack.c.b16 %v1343, %v1335
        %1472 = vmatprep.subr.bf16.mxu0 %v1401
        %1473 = vmatpush1.bf16.msra.mxu0 %v1400
        %1474 = vmatprep.subr.bf16.mxu0 %v1393
        %1475 = vmatpush1.bf16.msra.mxu0 %v1392
        %1476 = vmatprep.subr.bf16.mxu0 %v1385
        %1477 = vmatpush1.bf16.msra.mxu0 %v1384
        %1478 = vmatprep.subr.bf16.mxu0 %v1377
        %1479 = vmatpush1.bf16.msra.mxu0 %v1376
        %1480 = vmatprep.subr.bf16.mxu0 %v1369
        %1481 = vmatpush1.bf16.msra.mxu0 %v1368
        %1482 = vmatprep.subr.bf16.mxu0 %v1361
        %1483 = vmatpush1.bf16.msra.mxu0 %v1360
        %1484 = vmatprep.subr.bf16.mxu0 %v1353
        %1485 = vmatpush1.bf16.msra.mxu0 %v1352
        %1486 = vmatprep.subr.bf16.mxu0 %v1345
        %1487 = vmatpush1.bf16.msra.mxu0 %v1344
        %1488 = vmatprep.subr.bf16.mxu0 0
        %1489 = vmatpush2.bf16.msra.mxu0 0
        %1490 = vmatprep.subr.bf16.mxu0 0
        %1491 = vmatpush2.bf16.msra.mxu0 0
        %1492 = vmatprep.subr.bf16.mxu0 0
        %1493 = vmatpush2.bf16.msra.mxu0 0
        %1494 = vmatprep.subr.bf16.mxu0 0
        %1495 = vmatpush2.bf16.msra.mxu0 0
        %1496 = vmatprep.subr.bf16.mxu0 0
        %1497 = vmatpush2.bf16.msra.mxu0 0
        %1498 = vmatprep.subr.bf16.mxu0 0
        %1499 = vmatpush2.bf16.msra.mxu0 0
        %1500 = vmatprep.subr.bf16.mxu0 0
        %1501 = vmatpush2.bf16.msra.mxu0 0
        %1502 = vmatprep.subr.bf16.mxu0 0
        %1503 = vmatpush2.bf16.msra.mxu0 0
        %1504 = vmatprep.mubr.bf16.mxu0 0
        %1505 = vmatmul.mubr.bf16.gmra.mxu0 %v1045
        %v1506 = vpop.f32.mrf.mxu0
        %v1507 = vadd.f32 %v1115, %v1506
        %v1508 = vpop.f32.mrf.mxu0
        %v1509 = vadd.f32 %v1119, %v1508
        %v1510 = vpop.f32.mrf.mxu0
        %v1511 = vpop.f32.mrf.mxu0
        %1512 = vdwg.mxu0
        %1513 = vmatprep.subr.bf16.mxu0 %v1403
        %1514 = vmatpush1.bf16.msra.mxu0 %v1402
        %1515 = vmatprep.subr.bf16.mxu0 %v1395
        %1516 = vmatpush1.bf16.msra.mxu0 %v1394
        %1517 = vmatprep.subr.bf16.mxu0 %v1387
        %1518 = vmatpush1.bf16.msra.mxu0 %v1386
        %1519 = vmatprep.subr.bf16.mxu0 %v1379
        %1520 = vmatpush1.bf16.msra.mxu0 %v1378
        %1521 = vmatprep.subr.bf16.mxu0 %v1371
        %1522 = vmatpush1.bf16.msra.mxu0 %v1370
        %1523 = vmatprep.subr.bf16.mxu0 %v1363
        %1524 = vmatpush1.bf16.msra.mxu0 %v1362
        %1525 = vmatprep.subr.bf16.mxu0 %v1355
        %1526 = vmatpush1.bf16.msra.mxu0 %v1354
        %1527 = vmatprep.subr.bf16.mxu0 %v1347
        %1528 = vmatpush1.bf16.msra.mxu0 %v1346
        %1529 = vmatprep.subr.bf16.mxu0 0
        %1530 = vmatpush2.bf16.msra.mxu0 0
        %1531 = vmatprep.subr.bf16.mxu0 0
        %1532 = vmatpush2.bf16.msra.mxu0 0
        %1533 = vmatprep.subr.bf16.mxu0 0
        %1534 = vmatpush2.bf16.msra.mxu0 0
        %1535 = vmatprep.subr.bf16.mxu0 0
        %1536 = vmatpush2.bf16.msra.mxu0 0
        %1537 = vmatprep.subr.bf16.mxu0 0
        %1538 = vmatpush2.bf16.msra.mxu0 0
        %1539 = vmatprep.subr.bf16.mxu0 0
        %1540 = vmatpush2.bf16.msra.mxu0 0
        %1541 = vmatprep.subr.bf16.mxu0 0
        %1542 = vmatpush2.bf16.msra.mxu0 0
        %1543 = vmatprep.subr.bf16.mxu0 0
        %1544 = vmatpush2.bf16.msra.mxu0 0
        %1545 = vmatprep.mubr.bf16.mxu0 0
        %1546 = vmatmul.mubr.bf16.gmra.mxu0 %v1045
        %v1547 = vpop.f32.mrf.mxu0
        %v1548 = vadd.f32 %v1123, %v1547
        %v1549 = vpop.f32.mrf.mxu0
        %v1550 = vadd.f32 %v1127, %v1549
        %v1551 = vpop.f32.mrf.mxu0
        %v1552 = vpop.f32.mrf.mxu0
        %1553 = vdwg.mxu0
        %1554 = vmatprep.subr.bf16.mxu0 %v1405
        %1555 = vmatpush1.bf16.msra.mxu0 %v1404
        %1556 = vmatprep.subr.bf16.mxu0 %v1397
        %1557 = vmatpush1.bf16.msra.mxu0 %v1396
        %1558 = vmatprep.subr.bf16.mxu0 %v1389
        %1559 = vmatpush1.bf16.msra.mxu0 %v1388
        %1560 = vmatprep.subr.bf16.mxu0 %v1381
        %1561 = vmatpush1.bf16.msra.mxu0 %v1380
        %1562 = vmatprep.subr.bf16.mxu0 %v1373
        %1563 = vmatpush1.bf16.msra.mxu0 %v1372
        %1564 = vmatprep.subr.bf16.mxu0 %v1365
        %1565 = vmatpush1.bf16.msra.mxu0 %v1364
        %1566 = vmatprep.subr.bf16.mxu0 %v1357
        %1567 = vmatpush1.bf16.msra.mxu0 %v1356
        %1568 = vmatprep.subr.bf16.mxu0 %v1349
        %1569 = vmatpush1.bf16.msra.mxu0 %v1348
        %1570 = vmatprep.subr.bf16.mxu0 0
        %1571 = vmatpush2.bf16.msra.mxu0 0
        %1572 = vmatprep.subr.bf16.mxu0 0
        %1573 = vmatpush2.bf16.msra.mxu0 0
        %1574 = vmatprep.subr.bf16.mxu0 0
        %1575 = vmatpush2.bf16.msra.mxu0 0
        %1576 = vmatprep.subr.bf16.mxu0 0
        %1577 = vmatpush2.bf16.msra.mxu0 0
        %1578 = vmatprep.subr.bf16.mxu0 0
        %1579 = vmatpush2.bf16.msra.mxu0 0
        %1580 = vmatprep.subr.bf16.mxu0 0
        %1581 = vmatpush2.bf16.msra.mxu0 0
        %1582 = vmatprep.subr.bf16.mxu0 0
        %1583 = vmatpush2.bf16.msra.mxu0 0
        %1584 = vmatprep.subr.bf16.mxu0 0
        %1585 = vmatpush2.bf16.msra.mxu0 0
        %1586 = vmatprep.mubr.bf16.mxu0 0
        %1587 = vmatmul.mubr.bf16.gmra.mxu0 %v1045
        %v1588 = vpop.f32.mrf.mxu0
        %v1589 = vadd.f32 %v1131, %v1588
        %v1590 = vpop.f32.mrf.mxu0
        %v1591 = vadd.f32 %v1135, %v1590
        %v1592 = vpop.f32.mrf.mxu0
        %v1593 = vpop.f32.mrf.mxu0
        %1594 = vdwg.mxu0
        %1595 = vmatprep.subr.bf16.mxu0 %v1407
        %1596 = vmatpush1.bf16.msra.mxu0 %v1406
        %1597 = vmatprep.subr.bf16.mxu0 %v1399
        %1598 = vmatpush1.bf16.msra.mxu0 %v1398
        %1599 = vmatprep.subr.bf16.mxu0 %v1391
        %1600 = vmatpush1.bf16.msra.mxu0 %v1390
        %1601 = vmatprep.subr.bf16.mxu0 %v1383
        %1602 = vmatpush1.bf16.msra.mxu0 %v1382
        %1603 = vmatprep.subr.bf16.mxu0 %v1375
        %1604 = vmatpush1.bf16.msra.mxu0 %v1374
        %1605 = vmatprep.subr.bf16.mxu0 %v1367
        %1606 = vmatpush1.bf16.msra.mxu0 %v1366
        %1607 = vmatprep.subr.bf16.mxu0 %v1359
        %1608 = vmatpush1.bf16.msra.mxu0 %v1358
        %1609 = vmatprep.subr.bf16.mxu0 %v1351
        %1610 = vmatpush1.bf16.msra.mxu0 %v1350
        %1611 = vmatprep.subr.bf16.mxu0 0
        %1612 = vmatpush2.bf16.msra.mxu0 0
        %1613 = vmatprep.subr.bf16.mxu0 0
        %1614 = vmatpush2.bf16.msra.mxu0 0
        %1615 = vmatprep.subr.bf16.mxu0 0
        %1616 = vmatpush2.bf16.msra.mxu0 0
        %1617 = vmatprep.subr.bf16.mxu0 0
        %1618 = vmatpush2.bf16.msra.mxu0 0
        %1619 = vmatprep.subr.bf16.mxu0 0
        %1620 = vmatpush2.bf16.msra.mxu0 0
        %1621 = vmatprep.subr.bf16.mxu0 0
        %1622 = vmatpush2.bf16.msra.mxu0 0
        %1623 = vmatprep.subr.bf16.mxu0 0
        %1624 = vmatpush2.bf16.msra.mxu0 0
        %1625 = vmatprep.subr.bf16.mxu0 0
        %1626 = vmatpush2.bf16.msra.mxu0 0
        %1627 = vmatprep.mubr.bf16.mxu0 0
        %1628 = vmatmul.mubr.bf16.gmra.mxu0 %v1045
        %v1629 = vpop.f32.mrf.mxu0
        %v1630 = vadd.f32 %v1139, %v1629
        %v1631 = vpop.f32.mrf.mxu0
        %v1632 = vadd.f32 %v1143, %v1631
        %v1633 = vpop.f32.mrf.mxu0
        %v1634 = vpop.f32.mrf.mxu0
        %1635 = vdwg.mxu0
        %v1636 = vmax.f32 %v1507, 0.0
        %v1637 = vmax.f32 %v1509, 0.0
        %v1638 = vmax.f32 %v1548, 0.0
        %v1639 = vmax.f32 %v1550, 0.0
        %v1640 = vmax.f32 %v1589, 0.0
        %v1641 = vmax.f32 %v1591, 0.0
        %v1642 = vmax.f32 %v1630, 0.0
        %v1643 = vmax.f32 %v1632, 0.0
        %v1644 = vpack.c.bf16 %v1636, %v1636
        %v1645 = vpack.c.bf16 %v1637, %v1637
        %v1646 = vpack.c.bf16 %v1638, %v1638
        %v1647 = vpack.c.bf16 %v1639, %v1639
        %v1648 = vpack.c.bf16 %v1640, %v1640
        %v1649 = vpack.c.bf16 %v1641, %v1641
        %v1650 = vpack.c.bf16 %v1642, %v1642
        %v1651 = vpack.c.bf16 %v1643, %v1643
        %v1652 = vld [vmem:[%s623] sm:$0xf]
        %v1653 = vld [vmem:[%s623 + $0x4] sm:$0xf]
        %v1654 = vld [vmem:[%s623 + $0x8] sm:$0xf]
        %v1655 = vld [vmem:[%s623 + $0xc] sm:$0xf]
        %v1656 = vld [vmem:[%s623 + $0x10] sm:$0xf]
        %v1657 = vld [vmem:[%s623 + $0x14] sm:$0xf]
        %v1658 = vld [vmem:[%s623 + $0x18] sm:$0xf]
        %v1659 = vld [vmem:[%s623 + $0x1c] sm:$0xf]
        %v1660 = vld [vmem:[%s623 + $0x20] sm:$0xf]
        %v1661 = vld [vmem:[%s623 + $0x24] sm:$0xf]
        %v1662 = vld [vmem:[%s623 + $0x28] sm:$0xf]
        %v1663 = vld [vmem:[%s623 + $0x2c] sm:$0xf]
        %v1664 = vld [vmem:[%s623 + $0x30] sm:$0xf]
        %v1665 = vld [vmem:[%s623 + $0x34] sm:$0xf]
        %v1666 = vld [vmem:[%s623 + $0x38] sm:$0xf]
        %v1667 = vld [vmem:[%s623 + $0x3c] sm:$0xf]
        %v1668 = vld [vmem:[%s623 + $0x40] sm:$0xf]
        %v1669 = vld [vmem:[%s623 + $0x44] sm:$0xf]
        %v1670 = vld [vmem:[%s623 + $0x48] sm:$0xf]
        %v1671 = vld [vmem:[%s623 + $0x4c] sm:$0xf]
        %v1672 = vld [vmem:[%s623 + $0x50] sm:$0xf]
        %v1673 = vld [vmem:[%s623 + $0x54] sm:$0xf]
        %v1674 = vld [vmem:[%s623 + $0x58] sm:$0xf]
        %v1675 = vld [vmem:[%s623 + $0x5c] sm:$0xf]
        %v1676 = vld [vmem:[%s623 + $0x60] sm:$0xf]
        %v1677 = vld [vmem:[%s623 + $0x64] sm:$0xf]
        %v1678 = vld [vmem:[%s623 + $0x68] sm:$0xf]
        %v1679 = vld [vmem:[%s623 + $0x6c] sm:$0xf]
        %v1680 = vld [vmem:[%s623 + $0x70] sm:$0xf]
        %v1681 = vld [vmem:[%s623 + $0x74] sm:$0xf]
        %v1682 = vld [vmem:[%s623 + $0x78] sm:$0xf]
        %v1683 = vld [vmem:[%s623 + $0x7c] sm:$0xf]
        %v1684 = vld [vmem:[%s623 + $0x80] sm:$0xf]
        %v1685 = vld [vmem:[%s623 + $0x84] sm:$0xf]
        %v1686 = vld [vmem:[%s623 + $0x88] sm:$0xf]
        %v1687 = vld [vmem:[%s623 + $0x8c] sm:$0xf]
        %v1688 = vld [vmem:[%s623 + $0x90] sm:$0xf]
        %v1689 = vld [vmem:[%s623 + $0x94] sm:$0xf]
        %v1690 = vld [vmem:[%s623 + $0x98] sm:$0xf]
        %v1691 = vld [vmem:[%s623 + $0x9c] sm:$0xf]
        %v1692 = vld [vmem:[%s623 + $0xa0] sm:$0xf]
        %v1693 = vld [vmem:[%s623 + $0xa4] sm:$0xf]
        %v1694 = vld [vmem:[%s623 + $0xa8] sm:$0xf]
        %v1695 = vld [vmem:[%s623 + $0xac] sm:$0xf]
        %v1696 = vld [vmem:[%s623 + $0xb0] sm:$0xf]
        %v1697 = vld [vmem:[%s623 + $0xb4] sm:$0xf]
        %v1698 = vld [vmem:[%s623 + $0xb8] sm:$0xf]
        %v1699 = vld [vmem:[%s623 + $0xbc] sm:$0xf]
        %v1700 = vld [vmem:[%s623 + $0xc0] sm:$0xf]
        %v1701 = vld [vmem:[%s623 + $0xc4] sm:$0xf]
        %v1702 = vld [vmem:[%s623 + $0xc8] sm:$0xf]
        %v1703 = vld [vmem:[%s623 + $0xcc] sm:$0xf]
        %v1704 = vld [vmem:[%s623 + $0xd0] sm:$0xf]
        %v1705 = vld [vmem:[%s623 + $0xd4] sm:$0xf]
        %v1706 = vld [vmem:[%s623 + $0xd8] sm:$0xf]
        %v1707 = vld [vmem:[%s623 + $0xdc] sm:$0xf]
        %v1708 = vld [vmem:[%s623 + $0xe0] sm:$0xf]
        %v1709 = vld [vmem:[%s623 + $0xe4] sm:$0xf]
        %v1710 = vld [vmem:[%s623 + $0xe8] sm:$0xf]
        %v1711 = vld [vmem:[%s623 + $0xec] sm:$0xf]
        %v1712 = vld [vmem:[%s623 + $0xf0] sm:$0xf]
        %v1713 = vld [vmem:[%s623 + $0xf4] sm:$0xf]
        %v1714 = vld [vmem:[%s623 + $0xf8] sm:$0xf]
        %v1715 = vld [vmem:[%s623 + $0xfc] sm:$0xf]
        %v1716 = vld [vmem:[%s623 + $0x100] sm:$0xf]
        %v1717 = vld [vmem:[%s623 + $0x104] sm:$0xf]
        %v1718 = vld [vmem:[%s623 + $0x108] sm:$0xf]
        %v1719 = vld [vmem:[%s623 + $0x10c] sm:$0xf]
        %v1720 = vld [vmem:[%s623 + $0x110] sm:$0xf]
        %v1721 = vld [vmem:[%s623 + $0x114] sm:$0xf]
        %v1722 = vld [vmem:[%s623 + $0x118] sm:$0xf]
        %v1723 = vld [vmem:[%s623 + $0x11c] sm:$0xf]
        %v1724 = vld [vmem:[%s623 + $0x120] sm:$0xf]
        %v1725 = vld [vmem:[%s623 + $0x124] sm:$0xf]
        %v1726 = vld [vmem:[%s623 + $0x128] sm:$0xf]
        %v1727 = vld [vmem:[%s623 + $0x12c] sm:$0xf]
        %v1728 = vld [vmem:[%s623 + $0x130] sm:$0xf]
        %v1729 = vld [vmem:[%s623 + $0x134] sm:$0xf]
        %v1730 = vld [vmem:[%s623 + $0x138] sm:$0xf]
        %v1731 = vld [vmem:[%s623 + $0x13c] sm:$0xf]
        %v1732 = vld [vmem:[%s623 + $0x140] sm:$0xf]
        %v1733 = vld [vmem:[%s623 + $0x144] sm:$0xf]
        %v1734 = vld [vmem:[%s623 + $0x148] sm:$0xf]
        %v1735 = vld [vmem:[%s623 + $0x14c] sm:$0xf]
        %v1736 = vld [vmem:[%s623 + $0x150] sm:$0xf]
        %v1737 = vld [vmem:[%s623 + $0x154] sm:$0xf]
        %v1738 = vld [vmem:[%s623 + $0x158] sm:$0xf]
        %v1739 = vld [vmem:[%s623 + $0x15c] sm:$0xf]
        %v1740 = vld [vmem:[%s623 + $0x160] sm:$0xf]
        %v1741 = vld [vmem:[%s623 + $0x164] sm:$0xf]
        %v1742 = vld [vmem:[%s623 + $0x168] sm:$0xf]
        %v1743 = vld [vmem:[%s623 + $0x16c] sm:$0xf]
        %v1744 = vld [vmem:[%s623 + $0x170] sm:$0xf]
        %v1745 = vld [vmem:[%s623 + $0x174] sm:$0xf]
        %v1746 = vld [vmem:[%s623 + $0x178] sm:$0xf]
        %v1747 = vld [vmem:[%s623 + $0x17c] sm:$0xf]
        %v1748 = vld [vmem:[%s623 + $0x180] sm:$0xf]
        %v1749 = vld [vmem:[%s623 + $0x184] sm:$0xf]
        %v1750 = vld [vmem:[%s623 + $0x188] sm:$0xf]
        %v1751 = vld [vmem:[%s623 + $0x18c] sm:$0xf]
        %v1752 = vld [vmem:[%s623 + $0x190] sm:$0xf]
        %v1753 = vld [vmem:[%s623 + $0x194] sm:$0xf]
        %v1754 = vld [vmem:[%s623 + $0x198] sm:$0xf]
        %v1755 = vld [vmem:[%s623 + $0x19c] sm:$0xf]
        %v1756 = vld [vmem:[%s623 + $0x1a0] sm:$0xf]
        %v1757 = vld [vmem:[%s623 + $0x1a4] sm:$0xf]
        %v1758 = vld [vmem:[%s623 + $0x1a8] sm:$0xf]
        %v1759 = vld [vmem:[%s623 + $0x1ac] sm:$0xf]
        %v1760 = vld [vmem:[%s623 + $0x1b0] sm:$0xf]
        %v1761 = vld [vmem:[%s623 + $0x1b4] sm:$0xf]
        %v1762 = vld [vmem:[%s623 + $0x1b8] sm:$0xf]
        %v1763 = vld [vmem:[%s623 + $0x1bc] sm:$0xf]
        %v1764 = vld [vmem:[%s623 + $0x1c0] sm:$0xf]
        %v1765 = vld [vmem:[%s623 + $0x1c4] sm:$0xf]
        %v1766 = vld [vmem:[%s623 + $0x1c8] sm:$0xf]
        %v1767 = vld [vmem:[%s623 + $0x1cc] sm:$0xf]
        %v1768 = vld [vmem:[%s623 + $0x1d0] sm:$0xf]
        %v1769 = vld [vmem:[%s623 + $0x1d4] sm:$0xf]
        %v1770 = vld [vmem:[%s623 + $0x1d8] sm:$0xf]
        %v1771 = vld [vmem:[%s623 + $0x1dc] sm:$0xf]
        %v1772 = vld [vmem:[%s623 + $0x1e0] sm:$0xf]
        %v1773 = vld [vmem:[%s623 + $0x1e4] sm:$0xf]
        %v1774 = vld [vmem:[%s623 + $0x1e8] sm:$0xf]
        %v1775 = vld [vmem:[%s623 + $0x1ec] sm:$0xf]
        %v1776 = vld [vmem:[%s623 + $0x1f0] sm:$0xf]
        %v1777 = vld [vmem:[%s623 + $0x1f4] sm:$0xf]
        %v1778 = vld [vmem:[%s623 + $0x1f8] sm:$0xf]
        %v1779 = vld [vmem:[%s623 + $0x1fc] sm:$0xf]
        %v1780 = vld [vmem:[%s717] sm:$0x1]
        %v1782 = vlaneseq
        %v1783 = vshrl.u32 %v1782, 7
        %v1784 = vsub.s32 0, %v1783
        %v1785 = vrot.slane %v1780, %v1784
        %v1915 = vunpack.c.l.b16 %v1652
        %v1916 = vunpack.c.l.b16 %v1653
        %v1917 = vunpack.c.l.b16 %v1654
        %v1918 = vunpack.c.l.b16 %v1655
        %v1919 = vunpack.c.l.b16 %v1656
        %v1920 = vunpack.c.l.b16 %v1657
        %v1921 = vunpack.c.l.b16 %v1658
        %v1922 = vunpack.c.l.b16 %v1659
        %v1923 = vunpack.c.l.b16 %v1660
        %v1924 = vunpack.c.l.b16 %v1661
        %v1925 = vunpack.c.l.b16 %v1662
        %v1926 = vunpack.c.l.b16 %v1663
        %v1927 = vunpack.c.l.b16 %v1664
        %v1928 = vunpack.c.l.b16 %v1665
        %v1929 = vunpack.c.l.b16 %v1666
        %v1930 = vunpack.c.l.b16 %v1667
        %v1931 = vunpack.c.l.b16 %v1668
        %v1932 = vunpack.c.l.b16 %v1669
        %v1933 = vunpack.c.l.b16 %v1670
        %v1934 = vunpack.c.l.b16 %v1671
        %v1935 = vunpack.c.l.b16 %v1672
        %v1936 = vunpack.c.l.b16 %v1673
        %v1937 = vunpack.c.l.b16 %v1674
        %v1938 = vunpack.c.l.b16 %v1675
        %v1939 = vunpack.c.l.b16 %v1676
        %v1940 = vunpack.c.l.b16 %v1677
        %v1941 = vunpack.c.l.b16 %v1678
        %v1942 = vunpack.c.l.b16 %v1679
        %v1943 = vunpack.c.l.b16 %v1680
        %v1944 = vunpack.c.l.b16 %v1681
        %v1945 = vunpack.c.l.b16 %v1682
        %v1946 = vunpack.c.l.b16 %v1683
        %v1947 = vunpack.c.l.b16 %v1684
        %v1948 = vunpack.c.l.b16 %v1685
        %v1949 = vunpack.c.l.b16 %v1686
        %v1950 = vunpack.c.l.b16 %v1687
        %v1951 = vunpack.c.l.b16 %v1688
        %v1952 = vunpack.c.l.b16 %v1689
        %v1953 = vunpack.c.l.b16 %v1690
        %v1954 = vunpack.c.l.b16 %v1691
        %v1955 = vunpack.c.l.b16 %v1692
        %v1956 = vunpack.c.l.b16 %v1693
        %v1957 = vunpack.c.l.b16 %v1694
        %v1958 = vunpack.c.l.b16 %v1695
        %v1959 = vunpack.c.l.b16 %v1696
        %v1960 = vunpack.c.l.b16 %v1697
        %v1961 = vunpack.c.l.b16 %v1698
        %v1962 = vunpack.c.l.b16 %v1699
        %v1963 = vunpack.c.l.b16 %v1700
        %v1964 = vunpack.c.l.b16 %v1701
        %v1965 = vunpack.c.l.b16 %v1702
        %v1966 = vunpack.c.l.b16 %v1703
        %v1967 = vunpack.c.l.b16 %v1704
        %v1968 = vunpack.c.l.b16 %v1705
        %v1969 = vunpack.c.l.b16 %v1706
        %v1970 = vunpack.c.l.b16 %v1707
        %v1971 = vunpack.c.l.b16 %v1708
        %v1972 = vunpack.c.l.b16 %v1709
        %v1973 = vunpack.c.l.b16 %v1710
        %v1974 = vunpack.c.l.b16 %v1711
        %v1975 = vunpack.c.l.b16 %v1712
        %v1976 = vunpack.c.l.b16 %v1713
        %v1977 = vunpack.c.l.b16 %v1714
        %v1978 = vunpack.c.l.b16 %v1715
        %v1979 = vunpack.c.l.b16 %v1716
        %v1980 = vunpack.c.l.b16 %v1717
        %v1981 = vunpack.c.l.b16 %v1718
        %v1982 = vunpack.c.l.b16 %v1719
        %v1983 = vunpack.c.l.b16 %v1720
        %v1984 = vunpack.c.l.b16 %v1721
        %v1985 = vunpack.c.l.b16 %v1722
        %v1986 = vunpack.c.l.b16 %v1723
        %v1987 = vunpack.c.l.b16 %v1724
        %v1988 = vunpack.c.l.b16 %v1725
        %v1989 = vunpack.c.l.b16 %v1726
        %v1990 = vunpack.c.l.b16 %v1727
        %v1991 = vunpack.c.l.b16 %v1728
        %v1992 = vunpack.c.l.b16 %v1729
        %v1993 = vunpack.c.l.b16 %v1730
        %v1994 = vunpack.c.l.b16 %v1731
        %v1995 = vunpack.c.l.b16 %v1732
        %v1996 = vunpack.c.l.b16 %v1733
        %v1997 = vunpack.c.l.b16 %v1734
        %v1998 = vunpack.c.l.b16 %v1735
        %v1999 = vunpack.c.l.b16 %v1736
        %v2000 = vunpack.c.l.b16 %v1737
        %v2001 = vunpack.c.l.b16 %v1738
        %v2002 = vunpack.c.l.b16 %v1739
        %v2003 = vunpack.c.l.b16 %v1740
        %v2004 = vunpack.c.l.b16 %v1741
        %v2005 = vunpack.c.l.b16 %v1742
        %v2006 = vunpack.c.l.b16 %v1743
        %v2007 = vunpack.c.l.b16 %v1744
        %v2008 = vunpack.c.l.b16 %v1745
        %v2009 = vunpack.c.l.b16 %v1746
        %v2010 = vunpack.c.l.b16 %v1747
        %v2011 = vunpack.c.l.b16 %v1748
        %v2012 = vunpack.c.l.b16 %v1749
        %v2013 = vunpack.c.l.b16 %v1750
        %v2014 = vunpack.c.l.b16 %v1751
        %v2015 = vunpack.c.l.b16 %v1752
        %v2016 = vunpack.c.l.b16 %v1753
        %v2017 = vunpack.c.l.b16 %v1754
        %v2018 = vunpack.c.l.b16 %v1755
        %v2019 = vunpack.c.l.b16 %v1756
        %v2020 = vunpack.c.l.b16 %v1757
        %v2021 = vunpack.c.l.b16 %v1758
        %v2022 = vunpack.c.l.b16 %v1759
        %v2023 = vunpack.c.l.b16 %v1760
        %v2024 = vunpack.c.l.b16 %v1761
        %v2025 = vunpack.c.l.b16 %v1762
        %v2026 = vunpack.c.l.b16 %v1763
        %v2027 = vunpack.c.l.b16 %v1764
        %v2028 = vunpack.c.l.b16 %v1765
        %v2029 = vunpack.c.l.b16 %v1766
        %v2030 = vunpack.c.l.b16 %v1767
        %v2031 = vunpack.c.l.b16 %v1768
        %v2032 = vunpack.c.l.b16 %v1769
        %v2033 = vunpack.c.l.b16 %v1770
        %v2034 = vunpack.c.l.b16 %v1771
        %v2035 = vunpack.c.l.b16 %v1772
        %v2036 = vunpack.c.l.b16 %v1773
        %v2037 = vunpack.c.l.b16 %v1774
        %v2038 = vunpack.c.l.b16 %v1775
        %v2039 = vunpack.c.l.b16 %v1776
        %v2040 = vunpack.c.l.b16 %v1777
        %v2041 = vunpack.c.l.b16 %v1778
        %v2042 = vunpack.c.l.b16 %v1779
        %v2043 = vpack.c.b16 %v1916, %v1915
        %v2044 = vpack.c.b16 %v1918, %v1917
        %v2045 = vpack.c.b16 %v1920, %v1919
        %v2046 = vpack.c.b16 %v1922, %v1921
        %v2047 = vpack.c.b16 %v1924, %v1923
        %v2048 = vpack.c.b16 %v1926, %v1925
        %v2049 = vpack.c.b16 %v1928, %v1927
        %v2050 = vpack.c.b16 %v1930, %v1929
        %v2051 = vpack.c.b16 %v1932, %v1931
        %v2052 = vpack.c.b16 %v1934, %v1933
        %v2053 = vpack.c.b16 %v1936, %v1935
        %v2054 = vpack.c.b16 %v1938, %v1937
        %v2055 = vpack.c.b16 %v1940, %v1939
        %v2056 = vpack.c.b16 %v1942, %v1941
        %v2057 = vpack.c.b16 %v1944, %v1943
        %v2058 = vpack.c.b16 %v1946, %v1945
        %v2059 = vpack.c.b16 %v1948, %v1947
        %v2060 = vpack.c.b16 %v1950, %v1949
        %v2061 = vpack.c.b16 %v1952, %v1951
        %v2062 = vpack.c.b16 %v1954, %v1953
        %v2063 = vpack.c.b16 %v1956, %v1955
        %v2064 = vpack.c.b16 %v1958, %v1957
        %v2065 = vpack.c.b16 %v1960, %v1959
        %v2066 = vpack.c.b16 %v1962, %v1961
        %v2067 = vpack.c.b16 %v1964, %v1963
        %v2068 = vpack.c.b16 %v1966, %v1965
        %v2069 = vpack.c.b16 %v1968, %v1967
        %v2070 = vpack.c.b16 %v1970, %v1969
        %v2071 = vpack.c.b16 %v1972, %v1971
        %v2072 = vpack.c.b16 %v1974, %v1973
        %v2073 = vpack.c.b16 %v1976, %v1975
        %v2074 = vpack.c.b16 %v1978, %v1977
        %v2075 = vpack.c.b16 %v1980, %v1979
        %v2076 = vpack.c.b16 %v1982, %v1981
        %v2077 = vpack.c.b16 %v1984, %v1983
        %v2078 = vpack.c.b16 %v1986, %v1985
        %v2079 = vpack.c.b16 %v1988, %v1987
        %v2080 = vpack.c.b16 %v1990, %v1989
        %v2081 = vpack.c.b16 %v1992, %v1991
        %v2082 = vpack.c.b16 %v1994, %v1993
        %v2083 = vpack.c.b16 %v1996, %v1995
        %v2084 = vpack.c.b16 %v1998, %v1997
        %v2085 = vpack.c.b16 %v2000, %v1999
        %v2086 = vpack.c.b16 %v2002, %v2001
        %v2087 = vpack.c.b16 %v2004, %v2003
        %v2088 = vpack.c.b16 %v2006, %v2005
        %v2089 = vpack.c.b16 %v2008, %v2007
        %v2090 = vpack.c.b16 %v2010, %v2009
        %v2091 = vpack.c.b16 %v2012, %v2011
        %v2092 = vpack.c.b16 %v2014, %v2013
        %v2093 = vpack.c.b16 %v2016, %v2015
        %v2094 = vpack.c.b16 %v2018, %v2017
        %v2095 = vpack.c.b16 %v2020, %v2019
        %v2096 = vpack.c.b16 %v2022, %v2021
        %v2097 = vpack.c.b16 %v2024, %v2023
        %v2098 = vpack.c.b16 %v2026, %v2025
        %v2099 = vpack.c.b16 %v2028, %v2027
        %v2100 = vpack.c.b16 %v2030, %v2029
        %v2101 = vpack.c.b16 %v2032, %v2031
        %v2102 = vpack.c.b16 %v2034, %v2033
        %v2103 = vpack.c.b16 %v2036, %v2035
        %v2104 = vpack.c.b16 %v2038, %v2037
        %v2105 = vpack.c.b16 %v2040, %v2039
        %v2106 = vpack.c.b16 %v2042, %v2041
        %2171 = vmatprep.subr.bf16.mxu0 0
        %2172 = vmatpush1.bf16.msra.mxu0 %v2050
        %2173 = vmatprep.subr.bf16.mxu0 0
        %2174 = vmatpush1.bf16.msra.mxu0 %v2049
        %2175 = vmatprep.subr.bf16.mxu0 0
        %2176 = vmatpush1.bf16.msra.mxu0 %v2048
        %2177 = vmatprep.subr.bf16.mxu0 0
        %2178 = vmatpush1.bf16.msra.mxu0 %v2047
        %2179 = vmatprep.subr.bf16.mxu0 0
        %2180 = vmatpush1.bf16.msra.mxu0 %v2046
        %2181 = vmatprep.subr.bf16.mxu0 0
        %2182 = vmatpush1.bf16.msra.mxu0 %v2045
        %2183 = vmatprep.subr.bf16.mxu0 0
        %2184 = vmatpush1.bf16.msra.mxu0 %v2044
        %2185 = vmatprep.subr.bf16.mxu0 0
        %2186 = vmatpush1.bf16.msra.mxu0 %v2043
        %2187 = vmatprep.subr.bf16.mxu0 0
        %2188 = vmatpush2.bf16.msra.mxu0 %v2058
        %2189 = vmatprep.subr.bf16.mxu0 0
        %2190 = vmatpush2.bf16.msra.mxu0 %v2057
        %2191 = vmatprep.subr.bf16.mxu0 0
        %2192 = vmatpush2.bf16.msra.mxu0 %v2056
        %2193 = vmatprep.subr.bf16.mxu0 0
        %2194 = vmatpush2.bf16.msra.mxu0 %v2055
        %2195 = vmatprep.subr.bf16.mxu0 0
        %2196 = vmatpush2.bf16.msra.mxu0 %v2054
        %2197 = vmatprep.subr.bf16.mxu0 0
        %2198 = vmatpush2.bf16.msra.mxu0 %v2053
        %2199 = vmatprep.subr.bf16.mxu0 0
        %2200 = vmatpush2.bf16.msra.mxu0 %v2052
        %2201 = vmatprep.subr.bf16.mxu0 0
        %2202 = vmatpush2.bf16.msra.mxu0 %v2051
        %2203 = vmatprep.mubr.bf16.mxu0 %v1645
        %2204 = vmatmul.mubr.bf16.gmra.mxu0 %v1644
        %v2205 = vpop.f32.mrf.mxu0
        %v2206 = vadd.f32 %v1785, %v2205
        %v2207 = vpop.f32.mrf.mxu0
        %v2208 = vpop.f32.mrf.mxu0
        %v2209 = vpop.f32.mrf.mxu0
        %2210 = vdwg.mxu0
        %2211 = vmatprep.subr.bf16.mxu0 0
        %2212 = vmatpush1.bf16.msra.mxu0 %v2066
        %2213 = vmatprep.subr.bf16.mxu0 0
        %2214 = vmatpush1.bf16.msra.mxu0 %v2065
        %2215 = vmatprep.subr.bf16.mxu0 0
        %2216 = vmatpush1.bf16.msra.mxu0 %v2064
        %2217 = vmatprep.subr.bf16.mxu0 0
        %2218 = vmatpush1.bf16.msra.mxu0 %v2063
        %2219 = vmatprep.subr.bf16.mxu0 0
        %2220 = vmatpush1.bf16.msra.mxu0 %v2062
        %2221 = vmatprep.subr.bf16.mxu0 0
        %2222 = vmatpush1.bf16.msra.mxu0 %v2061
        %2223 = vmatprep.subr.bf16.mxu0 0
        %2224 = vmatpush1.bf16.msra.mxu0 %v2060
        %2225 = vmatprep.subr.bf16.mxu0 0
        %2226 = vmatpush1.bf16.msra.mxu0 %v2059
        %2227 = vmatprep.subr.bf16.mxu0 0
        %2228 = vmatpush2.bf16.msra.mxu0 %v2074
        %2229 = vmatprep.subr.bf16.mxu0 0
        %2230 = vmatpush2.bf16.msra.mxu0 %v2073
        %2231 = vmatprep.subr.bf16.mxu0 0
        %2232 = vmatpush2.bf16.msra.mxu0 %v2072
        %2233 = vmatprep.subr.bf16.mxu0 0
        %2234 = vmatpush2.bf16.msra.mxu0 %v2071
        %2235 = vmatprep.subr.bf16.mxu0 0
        %2236 = vmatpush2.bf16.msra.mxu0 %v2070
        %2237 = vmatprep.subr.bf16.mxu0 0
        %2238 = vmatpush2.bf16.msra.mxu0 %v2069
        %2239 = vmatprep.subr.bf16.mxu0 0
        %2240 = vmatpush2.bf16.msra.mxu0 %v2068
        %2241 = vmatprep.subr.bf16.mxu0 0
        %2242 = vmatpush2.bf16.msra.mxu0 %v2067
        %2243 = vmatprep.mubr.bf16.mxu0 %v1647
        %2244 = vmatmul.mubr.bf16.gmra.mxu0 %v1646
        %v2245 = vpop.f32.mrf.mxu0
        %v2246 = vadd.f32 %v2206, %v2245
        %v2247 = vpop.f32.mrf.mxu0
        %v2248 = vpop.f32.mrf.mxu0
        %v2249 = vpop.f32.mrf.mxu0
        %2250 = vdwg.mxu0
        %2251 = vmatprep.subr.bf16.mxu0 0
        %2252 = vmatpush1.bf16.msra.mxu0 %v2082
        %2253 = vmatprep.subr.bf16.mxu0 0
        %2254 = vmatpush1.bf16.msra.mxu0 %v2081
        %2255 = vmatprep.subr.bf16.mxu0 0
        %2256 = vmatpush1.bf16.msra.mxu0 %v2080
        %2257 = vmatprep.subr.bf16.mxu0 0
        %2258 = vmatpush1.bf16.msra.mxu0 %v2079
        %2259 = vmatprep.subr.bf16.mxu0 0
        %2260 = vmatpush1.bf16.msra.mxu0 %v2078
        %2261 = vmatprep.subr.bf16.mxu0 0
        %2262 = vmatpush1.bf16.msra.mxu0 %v2077
        %2263 = vmatprep.subr.bf16.mxu0 0
        %2264 = vmatpush1.bf16.msra.mxu0 %v2076
        %2265 = vmatprep.subr.bf16.mxu0 0
        %2266 = vmatpush1.bf16.msra.mxu0 %v2075
        %2267 = vmatprep.subr.bf16.mxu0 0
        %2268 = vmatpush2.bf16.msra.mxu0 %v2090
        %2269 = vmatprep.subr.bf16.mxu0 0
        %2270 = vmatpush2.bf16.msra.mxu0 %v2089
        %2271 = vmatprep.subr.bf16.mxu0 0
        %2272 = vmatpush2.bf16.msra.mxu0 %v2088
        %2273 = vmatprep.subr.bf16.mxu0 0
        %2274 = vmatpush2.bf16.msra.mxu0 %v2087
        %2275 = vmatprep.subr.bf16.mxu0 0
        %2276 = vmatpush2.bf16.msra.mxu0 %v2086
        %2277 = vmatprep.subr.bf16.mxu0 0
        %2278 = vmatpush2.bf16.msra.mxu0 %v2085
        %2279 = vmatprep.subr.bf16.mxu0 0
        %2280 = vmatpush2.bf16.msra.mxu0 %v2084
        %2281 = vmatprep.subr.bf16.mxu0 0
        %2282 = vmatpush2.bf16.msra.mxu0 %v2083
        %2283 = vmatprep.mubr.bf16.mxu0 %v1649
        %2284 = vmatmul.mubr.bf16.gmra.mxu0 %v1648
        %v2285 = vpop.f32.mrf.mxu0
        %v2286 = vadd.f32 %v2246, %v2285
        %v2287 = vpop.f32.mrf.mxu0
        %v2288 = vpop.f32.mrf.mxu0
        %v2289 = vpop.f32.mrf.mxu0
        %2290 = vdwg.mxu0
        %2291 = vmatprep.subr.bf16.mxu0 0
        %2292 = vmatpush1.bf16.msra.mxu0 %v2098
        %2293 = vmatprep.subr.bf16.mxu0 0
        %2294 = vmatpush1.bf16.msra.mxu0 %v2097
        %2295 = vmatprep.subr.bf16.mxu0 0
        %2296 = vmatpush1.bf16.msra.mxu0 %v2096
        %2297 = vmatprep.subr.bf16.mxu0 0
        %2298 = vmatpush1.bf16.msra.mxu0 %v2095
        %2299 = vmatprep.subr.bf16.mxu0 0
        %2300 = vmatpush1.bf16.msra.mxu0 %v2094
        %2301 = vmatprep.subr.bf16.mxu0 0
        %2302 = vmatpush1.bf16.msra.mxu0 %v2093
        %2303 = vmatprep.subr.bf16.mxu0 0
        %2304 = vmatpush1.bf16.msra.mxu0 %v2092
        %2305 = vmatprep.subr.bf16.mxu0 0
        %2306 = vmatpush1.bf16.msra.mxu0 %v2091
        %2307 = vmatprep.subr.bf16.mxu0 0
        %2308 = vmatpush2.bf16.msra.mxu0 %v2106
        %2309 = vmatprep.subr.bf16.mxu0 0
        %2310 = vmatpush2.bf16.msra.mxu0 %v2105
        %2311 = vmatprep.subr.bf16.mxu0 0
        %2312 = vmatpush2.bf16.msra.mxu0 %v2104
        %2313 = vmatprep.subr.bf16.mxu0 0
        %2314 = vmatpush2.bf16.msra.mxu0 %v2103
        %2315 = vmatprep.subr.bf16.mxu0 0
        %2316 = vmatpush2.bf16.msra.mxu0 %v2102
        %2317 = vmatprep.subr.bf16.mxu0 0
        %2318 = vmatpush2.bf16.msra.mxu0 %v2101
        %2319 = vmatprep.subr.bf16.mxu0 0
        %2320 = vmatpush2.bf16.msra.mxu0 %v2100
        %2321 = vmatprep.subr.bf16.mxu0 0
        %2322 = vmatpush2.bf16.msra.mxu0 %v2099
        %2323 = vmatprep.mubr.bf16.mxu0 %v1651
        %2324 = vmatmul.mubr.bf16.gmra.mxu0 %v1650
        %v2325 = vpop.f32.mrf.mxu0
        %v2326 = vadd.f32 %v2286, %v2325
        %v2327 = vpop.f32.mrf.mxu0
        %v2328 = vpop.f32.mrf.mxu0
        %v2329 = vpop.f32.mrf.mxu0
        %2330 = vdwg.mxu0
        %v2331 = vadd.f32 %v2326, %v733
        %v2332 = vlaneseq
        %v2333 = vand.u32 %v2332, 127
        %2334 = vadd.xlane.f32.xlu0 %v2331
        %v2335 = vpop.xlane.xlu0 %2334
        %v2336 = vmul.f32 %v2335, 0.010416667
        %vm2337 = vcmp.lt.s32.totalorder %v2333, 96
        %v2338 = vsub.f32 %v2331, %v2336
        %v2339 = vsel %vm2337, %v2338, 0.0
        %v2340 = vmul.f32 %v2339, %v2339
        %2341 = vadd.xlane.f32.xlu0 %v2340
        %v2342 = vpop.xlane.xlu0 %2341
        %v2343 = vmul.f32 %v2342, 0.010416667
        %v2344 = vadd.f32 %v2343, 1e-05
        %v2345 = vrsqrt.pop %v2344
        %v2346 = vmul.f32 %v2339, %v2345
        %v2347 = vld [vmem:[%s720] sm:$0x1]
        %v2349 = vlaneseq
        %v2350 = vshrl.u32 %v2349, 7
        %v2351 = vsub.s32 0, %v2350
        %v2352 = vrot.slane %v2347, %v2351
        %v2354 = vmul.f32 %v2346, %v2352
        %v2355 = vld [vmem:[%s723] sm:$0x1]
        %v2357 = vlaneseq
        %v2358 = vshrl.u32 %v2357, 7
        %v2359 = vsub.s32 0, %v2358
        %v2360 = vrot.slane %v2355, %v2359
        %v2362 = vadd.f32 %v2354, %v2360
        %2363 = vst [vmem:[%s731] sm:$0xff] %v2362
        %p2364 = scmp.lt.s32.totalorder %s37, 2
        %s2365 = scalar_select %p2364, %s37, 2
        %s2366 = smul.addr %s2365, 8
        %s2367 = scalar_lea.vmem %s12, %s2366
        %p2368 = scmp.lt.s32.totalorder %s37, 2
        %s2369 = scalar_select %p2368, %s37, 2
        %s2370 = smul.addr %s2369, 8
        %s2371 = scalar_lea.vmem %s13, %s2370
        // Predicated region
        $region93: #{relation_augmented_attention.1} parent=67 // pred_check
          %p2372 = pneg %p362
        $region94: #{relation_augmented_attention.1} parent=67 // pred_check_branch
          %2374 = sbr.rel (%p2372) target = $region96
        $region95: #{relation_augmented_attention.1} parent=67 // pred_region
          _
        $region96: #{relation_augmented_attention.1} parent=67 // pred_fallthru
          _
        // Predicated region
        $region97: #{relation_augmented_attention.1} parent=67 // pred_check
          %p2375 = pneg %p388
        $region98: #{relation_augmented_attention.1} parent=67 // pred_check_branch
          %2377 = sbr.rel (%p2375) target = $region100
        $region99: #{relation_augmented_attention.1} parent=67 // pred_region
          _
        $region100: #{relation_augmented_attention.1} parent=67 // pred_fallthru
          _
      $region68: #{relation_augmented_attention.1} parent=5 // pred_fallthru
        _
      %p2378 = scmp.le.s32.totalorder 2, %s32
      // Predicated region
      $region101: #{relation_augmented_attention.1} parent=5 // pred_check
        %p2379 = pneg %p2378
      $region102: #{relation_augmented_attention.1} parent=5 // pred_check_branch
        %2381 = sbr.rel (%p2379) target = $region104
      $region103: #{relation_augmented_attention.1} parent=5 // pred_region
        %s2382 = ssub.s32 %s32, 2
        // Predicated region
        $region105: #{relation_augmented_attention.1} parent=103 // pred_check
          %p2383 = pneg %p368
        $region106: #{relation_augmented_attention.1} parent=103 // pred_check_branch
          %2385 = sbr.rel (%p2383) target = $region108
        $region107: #{relation_augmented_attention.1} parent=103 // pred_region
          %p2386 = scmp.lt.s32.totalorder %s38, 2
          %s2387 = scalar_select %p2386, %s38, 2
          %s2388 = smul.addr %s2387, 8
          %s2389 = scalar_lea.vmem %s12, %s2388
        $region108: #{relation_augmented_attention.1} parent=103 // pred_fallthru
          _
        // Predicated region
        $region109: #{relation_augmented_attention.1} parent=103 // pred_check
          %p2390 = pneg %p394
        $region110: #{relation_augmented_attention.1} parent=103 // pred_check_branch
          %2392 = sbr.rel (%p2390) target = $region112
        $region111: #{relation_augmented_attention.1} parent=103 // pred_region
          %p2393 = scmp.lt.s32.totalorder %s38, 2
          %s2394 = scalar_select %p2393, %s38, 2
          %s2395 = smul.addr %s2394, 8
          %s2396 = scalar_lea.vmem %s13, %s2395
        $region112: #{relation_augmented_attention.1} parent=103 // pred_fallthru
          _
      $region104: #{relation_augmented_attention.1} parent=5 // pred_fallthru
        _
    $region6: #{relation_augmented_attention.1} parent=1 // loop_footer
      %s36 = sadd.s32 1, %s32
    $region7: #{relation_augmented_attention.1} parent=1 // loop_footer_branch
      %31 = sbr.rel target = $region3
    $region8: #{relation_augmented_attention.1} parent=1 // loop_exit
      _
    %2397 = vsyncpa [#allocation3], 1
    %s2398 = scalar_lea.sflag [#allocation3], 1
    %2399 = vsyncpa %s2398, 1
    %2400 = vsyncpa [#allocation5], 1
    %s2401 = scalar_lea.sflag [#allocation5], 1
    %2402 = vsyncpa %s2401, 1
    %2403 = vsyncpa [#allocation8], 1
    %s2404 = scalar_lea.sflag [#allocation8], 1
    %2405 = vsyncpa %s2404, 1
    %2406 = vsyncpa [#allocation11], 1
    %s2407 = scalar_lea.sflag [#allocation11], 1
    %2408 = vsyncpa %s2407, 1

</llo_original>
